<compile_context>
chip_gen: v7x
topology: tpu7x:2x2x1
jax: 0.10.0
libtpu: 0.0.40
codegen_flags: <defaults>
</compile_context>

<pallas_src>
import jax
import jax.numpy as jnp
from jax.experimental import pallas as pl
from jax.experimental.pallas import tpu as pltpu

PI = 3.14159265359
TM = 2048  # batch tile width on the lane axis (sweep 1024-4096 if retuning)


def pinn_kernel(xt_ref, l1_ref, l2_ref, l3_ref, l4_ref, out_ref):
    # Layouts (batch on lanes):
    #   xt_ref  : (2, TM)   row 0 = x, row 1 = t
    #   l1_ref  : (20, 3)   [w1_x | w1_t | b1]     (2 -> 20)
    #   l2_ref  : (20, 21)  [W2^T | b2]            (20 -> 20)
    #   l3_ref  : (20, 21)  [W3^T | b3]            (20 -> 20)
    #   l4_ref  : (20, 2)   [w4   | b4 in row 0]   (20 -> 1)
    #   out_ref : (1, TM)
    x = xt_ref[0:1, :]                   # (1, TM)
    t = xt_ref[1:2, :]                   # (1, TM)

    l1 = l1_ref[...]                     # (20, 3)
    w1x = l1[:, 0:1]                     # (20, 1)
    w1t = l1[:, 1:2]                     # (20, 1)
    b1 = l1[:, 2:3]                      # (20, 1)
    # Layer 1: K=2 contraction as two broadcast FMAs on the VPU.
    h = jnp.tanh(w1x * x + w1t * t + b1)                       # (20, TM)

    # Layers 2 and 3: 20x20 matmuls on the MXU (feature-major: W^T @ h).
    h = jnp.tanh(
        jnp.dot(l2_ref[:, 0:20], h, preferred_element_type=jnp.float32)
        + l2_ref[:, 20:21])                                    # (20, TM)
    h = jnp.tanh(
        jnp.dot(l3_ref[:, 0:20], h, preferred_element_type=jnp.float32)
        + l3_ref[:, 20:21])                                    # (20, TM)

    # Layer 4 (20 -> 1): VPU multiply + cross-sublane reduce (XLU slot).
    w4 = l4_ref[:, 0:1]                                        # (20, 1)
    b4 = l4_ref[0:1, 1:2]                                      # (1, 1)
    y = jnp.sum(h * w4, axis=0, keepdims=True) + b4            # (1, TM)

    # Hard boundary-condition factor; lane-dense epilogue and store.
    out_ref[...] = jnp.sin(PI * x) * y


def _pack_params(params):
    """Pack the 8 small (in,out)/(1,out) arrays into 4 per-layer f32 blocks."""
    f32 = lambda a: jnp.asarray(a, jnp.float32)
    w1, b1 = f32(params["w1"]), f32(params["b1"])   # (2, 20), (1, 20)
    w2, b2 = f32(params["w2"]), f32(params["b2"])   # (20, 20), (1, 20)
    w3, b3 = f32(params["w3"]), f32(params["b3"])   # (20, 20), (1, 20)
    w4, b4 = f32(params["w4"]), f32(params["b4"])   # (20, 1), (1, 1)

    l1 = jnp.stack([w1[0, :], w1[1, :], b1[0, :]], axis=1)     # (20, 3)
    l2 = jnp.concatenate([w2.T, b2.T], axis=1)                 # (20, 21)
    l3 = jnp.concatenate([w3.T, b3.T], axis=1)                 # (20, 21)
    b4col = jnp.zeros((20, 1), jnp.float32).at[0, 0].set(b4[0, 0])
    l4 = jnp.concatenate([w4, b4col], axis=1)                  # (20, 2)
    return l1, l2, l3, l4


@jax.jit
def pinn_forward(x, t, params):
    """x, t: (N, 1) float32.  params: dict with w1..w4 (in,out), b1..b4 (1,out)."""
    n = x.shape[0]
    n_pad = pl.cdiv(n, TM) * TM

    xr = jnp.reshape(x.astype(jnp.float32), (1, n))
    tr = jnp.reshape(t.astype(jnp.float32), (1, n))
    xt = jnp.pad(jnp.concatenate([xr, tr], axis=0),
                 ((0, 0), (0, n_pad - n)))                     # (2, n_pad)
    l1, l2, l3, l4 = _pack_params(params)

    full = lambda arr: pl.BlockSpec(arr.shape, lambda i: (0, 0))

    out = pl.pallas_call(
        pinn_kernel,
        out_shape=jax.ShapeDtypeStruct((1, n_pad), jnp.float32),
        grid=(n_pad // TM,),
        in_specs=[
            pl.BlockSpec((2, TM), lambda i: (0, i)),   # [x; t] tile (lane-dense)
            full(l1), full(l2), full(l3), full(l4),    # packed params (resident)
        ],
        out_specs=pl.BlockSpec((1, TM), lambda i: (0, i)),
        compiler_params=pltpu.CompilerParams(
            dimension_semantics=("parallel",)),
    )(xt, l1, l2, l3, l4)

    return out[0, :n].reshape(n, 1)


def init_params(key):
    """Deterministic synthetic init matching the module's layer shapes.

    PyTorch stores Linear weights as (out, in); here we keep (in, out) so the
    math x @ W + b is identical.
    """
    dims = [(2, 20), (20, 20), (20, 20), (20, 1)]
    params = {}
    for idx, (fan_in, fan_out) in enumerate(dims, start=1):
        key, kw, kb = jax.random.split(key, 3)
        bound = 1.0 / jnp.sqrt(fan_in)
        params[f"w{idx}"] = jax.random.uniform(
            kw, (fan_in, fan_out), jnp.float32, -bound, bound)
        params[f"b{idx}"] = jax.random.uniform(
            kb, (1, fan_out), jnp.float32, -bound, bound)
    return params


def reference_forward(x, t, params):
    """Pure-JAX reference identical to the PyTorch forward."""
    inp = jnp.concatenate([x, t], axis=1)
    h = jnp.tanh(inp @ params["w1"] + params["b1"])
    h = jnp.tanh(h @ params["w2"] + params["b2"])
    h = jnp.tanh(h @ params["w3"] + params["b3"])
    y = h @ params["w4"] + params["b4"]
    return jnp.sin(PI * x) * y


if __name__ == "__main__":
    key = jax.random.PRNGKey(0)
    key, kx, kt = jax.random.split(key, 3)

    N = 64  # small batch of collocation points
    x = jax.random.uniform(kx, (N, 1), jnp.float32)   # spatial coord in [0,1)
    t = jax.random.uniform(kt, (N, 1), jnp.float32)   # time coord in [0,1)

    params = init_params(key)

    out = pinn_forward(x, t, params)
    out = jax.block_until_ready(out)

    ref = reference_forward(x, t, params)
    assert out.shape == (N, 1)
    assert jnp.allclose(out, ref, atol=5e-5, rtol=5e-5), "mismatch vs reference"

    print("KERNEL_OK")
</pallas_src>

<mosaic_0001>
module attributes {stable_mosaic.version = 11 : i64} {
  func.func @pinn_kernel(%arg0: i32, %arg1: memref<2x2048xf32, #tpu.memory_space<vmem>>, %arg2: memref<20x3xf32, #tpu.memory_space<vmem>>, %arg3: memref<20x21xf32, #tpu.memory_space<vmem>>, %arg4: memref<20x21xf32, #tpu.memory_space<vmem>>, %arg5: memref<20x2xf32, #tpu.memory_space<vmem>>, %arg6: memref<1x2048xf32, #tpu.memory_space<vmem>>) attributes {dimension_semantics = [#tpu.dimension_semantics<parallel>], iteration_bounds = array<i64: 1>, scalar_prefetch = 0 : i64, scratch_operands = 0 : i64, tpu.core_type = #tpu.core_type<tc>, window_params = [{transform_indices = @transform_0, window_bounds = array<i64: 2, 2048>}, {pipeline_mode = #tpu.pipeline_mode<synchronous>, transform_indices = @transform_1, window_bounds = array<i64: 20, 3>}, {pipeline_mode = #tpu.pipeline_mode<synchronous>, transform_indices = @transform_2, window_bounds = array<i64: 20, 21>}, {pipeline_mode = #tpu.pipeline_mode<synchronous>, transform_indices = @transform_3, window_bounds = array<i64: 20, 21>}, {pipeline_mode = #tpu.pipeline_mode<synchronous>, transform_indices = @transform_4, window_bounds = array<i64: 20, 2>}, {transform_indices = @transform_5, window_bounds = array<i64: 1, 2048>}]} {
    %c0 = arith.constant 0 : index
    %c0_0 = arith.constant 0 : index
    %0 = vector.load %arg1[%c0, %c0_0] : memref<2x2048xf32, #tpu.memory_space<vmem>>, vector<1x2048xf32>
    %c1 = arith.constant 1 : index
    %c0_1 = arith.constant 0 : index
    %1 = vector.load %arg1[%c1, %c0_1] : memref<2x2048xf32, #tpu.memory_space<vmem>>, vector<1x2048xf32>
    %c0_2 = arith.constant 0 : index
    %c0_3 = arith.constant 0 : index
    %2 = vector.load %arg2[%c0_2, %c0_3] : memref<20x3xf32, #tpu.memory_space<vmem>>, vector<20x3xf32>
    %3 = vector.extract_strided_slice %2 {offsets = [0, 0], sizes = [20, 1], strides = [1, 1]} : vector<20x3xf32> to vector<20x1xf32>
    %4 = vector.extract_strided_slice %2 {offsets = [0, 1], sizes = [20, 1], strides = [1, 1]} : vector<20x3xf32> to vector<20x1xf32>
    %5 = vector.extract_strided_slice %2 {offsets = [0, 2], sizes = [20, 1], strides = [1, 1]} : vector<20x3xf32> to vector<20x1xf32>
    %6 = vector.broadcast %3 : vector<20x1xf32> to vector<20x2048xf32>
    %7 = vector.broadcast %0 : vector<1x2048xf32> to vector<20x2048xf32>
    %8 = arith.mulf %6, %7 : vector<20x2048xf32>
    %9 = vector.broadcast %4 : vector<20x1xf32> to vector<20x2048xf32>
    %10 = vector.broadcast %1 : vector<1x2048xf32> to vector<20x2048xf32>
    %11 = arith.mulf %9, %10 : vector<20x2048xf32>
    %12 = arith.addf %8, %11 : vector<20x2048xf32>
    %13 = vector.broadcast %5 : vector<20x1xf32> to vector<20x2048xf32>
    %14 = arith.addf %12, %13 : vector<20x2048xf32>
    %15 = math.tanh %14 : vector<20x2048xf32>
    %c0_4 = arith.constant 0 : index
    %c0_5 = arith.constant 0 : index
    %16 = vector.load %arg3[%c0_4, %c0_5] : memref<20x21xf32, #tpu.memory_space<vmem>>, vector<20x20xf32>
    %cst = arith.constant dense<0.000000e+00> : vector<20x2048xf32>
    %17 = tpu.matmul %16, %15, %cst {dimension_numbers = #tpu.dot_dimension_numbers<[1], [0], [0], [1], [0, 0, 1, 1], [], []>} : vector<20x20xf32>, vector<20x2048xf32>, vector<20x2048xf32> -> vector<20x2048xf32>
    %c0_6 = arith.constant 0 : index
    %c20 = arith.constant 20 : index
    %18 = vector.load %arg3[%c0_6, %c20] : memref<20x21xf32, #tpu.memory_space<vmem>>, vector<20x1xf32>
    %19 = vector.broadcast %18 : vector<20x1xf32> to vector<20x2048xf32>
    %20 = arith.addf %17, %19 : vector<20x2048xf32>
    %21 = math.tanh %20 : vector<20x2048xf32>
    %c0_7 = arith.constant 0 : index
    %c0_8 = arith.constant 0 : index
    %22 = vector.load %arg4[%c0_7, %c0_8] : memref<20x21xf32, #tpu.memory_space<vmem>>, vector<20x20xf32>
    %cst_9 = arith.constant dense<0.000000e+00> : vector<20x2048xf32>
    %23 = tpu.matmul %22, %21, %cst_9 {dimension_numbers = #tpu.dot_dimension_numbers<[1], [0], [0], [1], [0, 0, 1, 1], [], []>} : vector<20x20xf32>, vector<20x2048xf32>, vector<20x2048xf32> -> vector<20x2048xf32>
    %c0_10 = arith.constant 0 : index
    %c20_11 = arith.constant 20 : index
    %24 = vector.load %arg4[%c0_10, %c20_11] : memref<20x21xf32, #tpu.memory_space<vmem>>, vector<20x1xf32>
    %25 = vector.broadcast %24 : vector<20x1xf32> to vector<20x2048xf32>
    %26 = arith.addf %23, %25 : vector<20x2048xf32>
    %27 = math.tanh %26 : vector<20x2048xf32>
    %c0_12 = arith.constant 0 : index
    %c0_13 = arith.constant 0 : index
    %28 = vector.load %arg5[%c0_12, %c0_13] : memref<20x2xf32, #tpu.memory_space<vmem>>, vector<20x1xf32>
    %c0_14 = arith.constant 0 : index
    %c1_15 = arith.constant 1 : index
    %29 = vector.load %arg5[%c0_14, %c1_15] : memref<20x2xf32, #tpu.memory_space<vmem>>, vector<1x1xf32>
    %30 = vector.broadcast %28 : vector<20x1xf32> to vector<20x2048xf32>
    %31 = arith.mulf %27, %30 : vector<20x2048xf32>
    %cst_16 = arith.constant dense<0.000000e+00> : vector<2048xf32>
    %32 = vector.multi_reduction <add>, %31, %cst_16 [0] : vector<20x2048xf32> to vector<2048xf32>
    %33 = vector.shape_cast %32 : vector<2048xf32> to vector<1x2048xf32>
    %34 = vector.broadcast %29 : vector<1x1xf32> to vector<1x2048xf32>
    %35 = arith.addf %33, %34 : vector<1x2048xf32>
    %cst_17 = arith.constant 3.14159274 : f32
    %36 = vector.broadcast %cst_17 : f32 to vector<1x2048xf32>
    %37 = arith.mulf %36, %0 : vector<1x2048xf32>
    %38 = math.sin %37 : vector<1x2048xf32>
    %39 = arith.mulf %38, %35 : vector<1x2048xf32>
    %c0_18 = arith.constant 0 : index
    %c0_19 = arith.constant 0 : index
    %40 = vector.load %arg6[%c0_18, %c0_19] : memref<1x2048xf32, #tpu.memory_space<vmem>>, vector<1x2048xf32>
    tpu.vector_store %arg6[%c0_18, %c0_19], %39 {strides = array<i32>} : memref<1x2048xf32, #tpu.memory_space<vmem>>, vector<1x2048xf32>,
    return
  }
  func.func @transform_0(%arg0: i32) -> (i32, i32) {
    %c0_i32 = arith.constant 0 : i32
    %c0_i32_0 = arith.constant 0 : i32
    return %c0_i32, %arg0 : i32, i32
  }
  func.func @transform_1(%arg0: i32) -> (i32, i32) {
    %c0_i32 = arith.constant 0 : i32
    %c0_i32_0 = arith.constant 0 : i32
    %c0_i32_1 = arith.constant 0 : i32
    return %c0_i32, %c0_i32_0 : i32, i32
  }
  func.func @transform_2(%arg0: i32) -> (i32, i32) {
    %c0_i32 = arith.constant 0 : i32
    %c0_i32_0 = arith.constant 0 : i32
    %c0_i32_1 = arith.constant 0 : i32
    return %c0_i32, %c0_i32_0 : i32, i32
  }
  func.func @transform_3(%arg0: i32) -> (i32, i32) {
    %c0_i32 = arith.constant 0 : i32
    %c0_i32_0 = arith.constant 0 : i32
    %c0_i32_1 = arith.constant 0 : i32
    return %c0_i32, %c0_i32_0 : i32, i32
  }
  func.func @transform_4(%arg0: i32) -> (i32, i32) {
    %c0_i32 = arith.constant 0 : i32
    %c0_i32_0 = arith.constant 0 : i32
    %c0_i32_1 = arith.constant 0 : i32
    return %c0_i32, %c0_i32_0 : i32, i32
  }
  func.func @transform_5(%arg0: i32) -> (i32, i32) {
    %c0_i32 = arith.constant 0 : i32
    %c0_i32_0 = arith.constant 0 : i32
    return %c0_i32, %arg0 : i32, i32
  }
}

</mosaic_0001>

<llo_original>
// kernel: pinn_forward.1
$region0: #{pinn_forward.1}
  #allocation0 [shape = 'u32[]', space=smem, size = 0x4, offset = 0x4, fixed_abs, tag = 'smem constant byte address 0x4 - core index']
  #allocation1 [shape = 'u32[144,128]{1,0:T(1,128)}', space=vmem, size = 0x12000, scoped, tag = 'internal scratch']
  %s0 = inlined_call_operand.vmem [shape: f32[2,2048], index: 0, kind: input, shape index: {}]
  %s1 = inlined_call_operand.vmem [shape: f32[20,3], index: 1, kind: input, shape index: {}]
  %s2 = inlined_call_operand.vmem [shape: f32[20,21], index: 2, kind: input, shape index: {}]
  %s3 = inlined_call_operand.vmem [shape: f32[20,21], index: 3, kind: input, shape index: {}]
  %s4 = inlined_call_operand.vmem [shape: f32[20,2], index: 4, kind: input, shape index: {}]
  %s5 = inlined_call_operand.vmem [shape: f32[1,2048], index: 5, kind: output, shape index: {}]
  %s6 = sld [smem:[#allocation0]]
  $region30: #{pinn_forward.1} parent=0
    _
  %s8 = ssub.s32 1, %s6
  %s9 = scalar_select 0, %s8, %s6
  // Predicated region
  $region2: #{pinn_forward.1} parent=0 // pred_check
    _
  $region3: #{pinn_forward.1} parent=0 // pred_check_branch
    %11 = sbr.rel (0) target = $region5
  $region4: #{pinn_forward.1} parent=0 // pred_region
    _
  $region5: #{pinn_forward.1} parent=0 // pred_fallthru
    _
  // Predicated region
  $region6: #{pinn_forward.1} parent=0 // pred_check
    _
  $region7: #{pinn_forward.1} parent=0 // pred_check_branch
    %13 = sbr.rel (0) target = $region9
  $region8: #{pinn_forward.1} parent=0 // pred_region
    _
  $region9: #{pinn_forward.1} parent=0 // pred_fallthru
    _
  // Predicated region
  $region10: #{pinn_forward.1} parent=0 // pred_check
    _
  $region11: #{pinn_forward.1} parent=0 // pred_check_branch
    %15 = sbr.rel (0) target = $region13
  $region12: #{pinn_forward.1} parent=0 // pred_region
    _
  $region13: #{pinn_forward.1} parent=0 // pred_fallthru
    _
  // Predicated region
  $region14: #{pinn_forward.1} parent=0 // pred_check
    _
  $region15: #{pinn_forward.1} parent=0 // pred_check_branch
    %17 = sbr.rel (0) target = $region17
  $region16: #{pinn_forward.1} parent=0 // pred_region
    _
  $region17: #{pinn_forward.1} parent=0 // pred_fallthru
    _
  // Predicated region
  $region18: #{pinn_forward.1} parent=0 // pred_check
    _
  $region19: #{pinn_forward.1} parent=0 // pred_check_branch
    %19 = sbr.rel (0) target = $region21
  $region20: #{pinn_forward.1} parent=0 // pred_region
    _
  $region21: #{pinn_forward.1} parent=0 // pred_fallthru
    _
  %v20 = vld [vmem:[%s0] ss:$2 sm:$0xff]
  %s21 = scalar_lea.vmem %s0, 16
  %v22 = vld [vmem:[%s21] ss:$2 sm:$0xff]
  %s23 = scalar_lea.vmem %s0, 1
  %v24 = vld [vmem:[%s23] ss:$2 sm:$0xff]
  %s25 = scalar_lea.vmem %s0, 17
  %v26 = vld [vmem:[%s25] ss:$2 sm:$0xff]
  %v27 = vld [vmem:[%s1] sm:$0xff]
  %v28 = vld [vmem:[%s1 + $0x8] sm:$0xff]
  %v29 = vld [vmem:[%s1 + $0x10] sm:$0xf]
  %31 = vset.pattern.permute.xlu0 0
  %32 = vperm.xlu0 %31, %v27
  %v33 = vpop.permute.xlu0 %32
  %36 = vset.pattern.permute.xlu0 0
  %37 = vperm.xlu0 %36, %v28
  %v38 = vpop.permute.xlu0 %37
  %41 = vset.pattern.permute.xlu0 0
  %42 = vperm.xlu0 %41, %v29
  %v43 = vpop.permute.xlu0 %42
  %v47 = vlaneseq
  %v48 = vshrl.u32 %v47, 7
  %v49 = vsub.s32 0, %v48
  %v50 = vrot.slane %v20, %v49
  %v51 = vlaneseq
  %v52 = vshrl.u32 %v51, 7
  %v53 = vsub.s32 1, %v52
  %v54 = vrot.slane %v20, %v53
  %v55 = vlaneseq
  %v56 = vshrl.u32 %v55, 7
  %v57 = vsub.s32 2, %v56
  %v58 = vrot.slane %v20, %v57
  %v59 = vlaneseq
  %v60 = vshrl.u32 %v59, 7
  %v61 = vsub.s32 3, %v60
  %v62 = vrot.slane %v20, %v61
  %v63 = vlaneseq
  %v64 = vshrl.u32 %v63, 7
  %v65 = vsub.s32 4, %v64
  %v66 = vrot.slane %v20, %v65
  %v67 = vlaneseq
  %v68 = vshrl.u32 %v67, 7
  %v69 = vsub.s32 5, %v68
  %v70 = vrot.slane %v20, %v69
  %v71 = vlaneseq
  %v72 = vshrl.u32 %v71, 7
  %v73 = vsub.s32 6, %v72
  %v74 = vrot.slane %v20, %v73
  %v75 = vlaneseq
  %v76 = vshrl.u32 %v75, 7
  %v77 = vsub.s32 7, %v76
  %v78 = vrot.slane %v20, %v77
  %v79 = vlaneseq
  %v80 = vshrl.u32 %v79, 7
  %v81 = vsub.s32 0, %v80
  %v82 = vrot.slane %v22, %v81
  %v83 = vlaneseq
  %v84 = vshrl.u32 %v83, 7
  %v85 = vsub.s32 1, %v84
  %v86 = vrot.slane %v22, %v85
  %v87 = vlaneseq
  %v88 = vshrl.u32 %v87, 7
  %v89 = vsub.s32 2, %v88
  %v90 = vrot.slane %v22, %v89
  %v91 = vlaneseq
  %v92 = vshrl.u32 %v91, 7
  %v93 = vsub.s32 3, %v92
  %v94 = vrot.slane %v22, %v93
  %v95 = vlaneseq
  %v96 = vshrl.u32 %v95, 7
  %v97 = vsub.s32 4, %v96
  %v98 = vrot.slane %v22, %v97
  %v99 = vlaneseq
  %v100 = vshrl.u32 %v99, 7
  %v101 = vsub.s32 5, %v100
  %v102 = vrot.slane %v22, %v101
  %v103 = vlaneseq
  %v104 = vshrl.u32 %v103, 7
  %v105 = vsub.s32 6, %v104
  %v106 = vrot.slane %v22, %v105
  %v107 = vlaneseq
  %v108 = vshrl.u32 %v107, 7
  %v109 = vsub.s32 7, %v108
  %v110 = vrot.slane %v22, %v109
  %v127 = vmul.f32 %v33, %v50
  %v128 = vmul.f32 %v33, %v54
  %v129 = vmul.f32 %v33, %v58
  %v130 = vmul.f32 %v33, %v62
  %v131 = vmul.f32 %v33, %v66
  %v132 = vmul.f32 %v33, %v70
  %v133 = vmul.f32 %v33, %v74
  %v134 = vmul.f32 %v33, %v78
  %v135 = vmul.f32 %v33, %v82
  %v136 = vmul.f32 %v33, %v86
  %v137 = vmul.f32 %v33, %v90
  %v138 = vmul.f32 %v33, %v94
  %v139 = vmul.f32 %v33, %v98
  %v140 = vmul.f32 %v33, %v102
  %v141 = vmul.f32 %v33, %v106
  %v142 = vmul.f32 %v33, %v110
  %v143 = vmul.f32 %v38, %v50
  %v144 = vmul.f32 %v38, %v54
  %v145 = vmul.f32 %v38, %v58
  %v146 = vmul.f32 %v38, %v62
  %v147 = vmul.f32 %v38, %v66
  %v148 = vmul.f32 %v38, %v70
  %v149 = vmul.f32 %v38, %v74
  %v150 = vmul.f32 %v38, %v78
  %v151 = vmul.f32 %v38, %v82
  %v152 = vmul.f32 %v38, %v86
  %v153 = vmul.f32 %v38, %v90
  %v154 = vmul.f32 %v38, %v94
  %v155 = vmul.f32 %v38, %v98
  %v156 = vmul.f32 %v38, %v102
  %v157 = vmul.f32 %v38, %v106
  %v158 = vmul.f32 %v38, %v110
  %v159 = vmul.f32 %v43, %v50
  %v160 = vmul.f32 %v43, %v54
  %v161 = vmul.f32 %v43, %v58
  %v162 = vmul.f32 %v43, %v62
  %v163 = vmul.f32 %v43, %v66
  %v164 = vmul.f32 %v43, %v70
  %v165 = vmul.f32 %v43, %v74
  %v166 = vmul.f32 %v43, %v78
  %v167 = vmul.f32 %v43, %v82
  %v168 = vmul.f32 %v43, %v86
  %v169 = vmul.f32 %v43, %v90
  %v170 = vmul.f32 %v43, %v94
  %v171 = vmul.f32 %v43, %v98
  %v172 = vmul.f32 %v43, %v102
  %v173 = vmul.f32 %v43, %v106
  %v174 = vmul.f32 %v43, %v110
  %175 = vset.pattern.permute.xlu0 1
  %176 = vperm.xlu0 %175, %v27
  %v177 = vpop.permute.xlu0 %176
  %179 = vset.pattern.permute.xlu0 1
  %180 = vperm.xlu0 %179, %v28
  %v181 = vpop.permute.xlu0 %180
  %183 = vset.pattern.permute.xlu0 1
  %184 = vperm.xlu0 %183, %v29
  %v185 = vpop.permute.xlu0 %184
  %v189 = vlaneseq
  %v190 = vshrl.u32 %v189, 7
  %v191 = vsub.s32 0, %v190
  %v192 = vrot.slane %v24, %v191
  %v193 = vlaneseq
  %v194 = vshrl.u32 %v193, 7
  %v195 = vsub.s32 1, %v194
  %v196 = vrot.slane %v24, %v195
  %v197 = vlaneseq
  %v198 = vshrl.u32 %v197, 7
  %v199 = vsub.s32 2, %v198
  %v200 = vrot.slane %v24, %v199
  %v201 = vlaneseq
  %v202 = vshrl.u32 %v201, 7
  %v203 = vsub.s32 3, %v202
  %v204 = vrot.slane %v24, %v203
  %v205 = vlaneseq
  %v206 = vshrl.u32 %v205, 7
  %v207 = vsub.s32 4, %v206
  %v208 = vrot.slane %v24, %v207
  %v209 = vlaneseq
  %v210 = vshrl.u32 %v209, 7
  %v211 = vsub.s32 5, %v210
  %v212 = vrot.slane %v24, %v211
  %v213 = vlaneseq
  %v214 = vshrl.u32 %v213, 7
  %v215 = vsub.s32 6, %v214
  %v216 = vrot.slane %v24, %v215
  %v217 = vlaneseq
  %v218 = vshrl.u32 %v217, 7
  %v219 = vsub.s32 7, %v218
  %v220 = vrot.slane %v24, %v219
  %v221 = vlaneseq
  %v222 = vshrl.u32 %v221, 7
  %v223 = vsub.s32 0, %v222
  %v224 = vrot.slane %v26, %v223
  %v225 = vlaneseq
  %v226 = vshrl.u32 %v225, 7
  %v227 = vsub.s32 1, %v226
  %v228 = vrot.slane %v26, %v227
  %v229 = vlaneseq
  %v230 = vshrl.u32 %v229, 7
  %v231 = vsub.s32 2, %v230
  %v232 = vrot.slane %v26, %v231
  %v233 = vlaneseq
  %v234 = vshrl.u32 %v233, 7
  %v235 = vsub.s32 3, %v234
  %v236 = vrot.slane %v26, %v235
  %v237 = vlaneseq
  %v238 = vshrl.u32 %v237, 7
  %v239 = vsub.s32 4, %v238
  %v240 = vrot.slane %v26, %v239
  %v241 = vlaneseq
  %v242 = vshrl.u32 %v241, 7
  %v243 = vsub.s32 5, %v242
  %v244 = vrot.slane %v26, %v243
  %v245 = vlaneseq
  %v246 = vshrl.u32 %v245, 7
  %v247 = vsub.s32 6, %v246
  %v248 = vrot.slane %v26, %v247
  %v249 = vlaneseq
  %v250 = vshrl.u32 %v249, 7
  %v251 = vsub.s32 7, %v250
  %v252 = vrot.slane %v26, %v251
  %v269 = vmul.f32 %v177, %v192
  %v270 = vmul.f32 %v177, %v196
  %v271 = vmul.f32 %v177, %v200
  %v272 = vmul.f32 %v177, %v204
  %v273 = vmul.f32 %v177, %v208
  %v274 = vmul.f32 %v177, %v212
  %v275 = vmul.f32 %v177, %v216
  %v276 = vmul.f32 %v177, %v220
  %v277 = vmul.f32 %v177, %v224
  %v278 = vmul.f32 %v177, %v228
  %v279 = vmul.f32 %v177, %v232
  %v280 = vmul.f32 %v177, %v236
  %v281 = vmul.f32 %v177, %v240
  %v282 = vmul.f32 %v177, %v244
  %v283 = vmul.f32 %v177, %v248
  %v284 = vmul.f32 %v177, %v252
  %v285 = vmul.f32 %v181, %v192
  %v286 = vmul.f32 %v181, %v196
  %v287 = vmul.f32 %v181, %v200
  %v288 = vmul.f32 %v181, %v204
  %v289 = vmul.f32 %v181, %v208
  %v290 = vmul.f32 %v181, %v212
  %v291 = vmul.f32 %v181, %v216
  %v292 = vmul.f32 %v181, %v220
  %v293 = vmul.f32 %v181, %v224
  %v294 = vmul.f32 %v181, %v228
  %v295 = vmul.f32 %v181, %v232
  %v296 = vmul.f32 %v181, %v236
  %v297 = vmul.f32 %v181, %v240
  %v298 = vmul.f32 %v181, %v244
  %v299 = vmul.f32 %v181, %v248
  %v300 = vmul.f32 %v181, %v252
  %v301 = vmul.f32 %v185, %v192
  %v302 = vmul.f32 %v185, %v196
  %v303 = vmul.f32 %v185, %v200
  %v304 = vmul.f32 %v185, %v204
  %v305 = vmul.f32 %v185, %v208
  %v306 = vmul.f32 %v185, %v212
  %v307 = vmul.f32 %v185, %v216
  %v308 = vmul.f32 %v185, %v220
  %v309 = vmul.f32 %v185, %v224
  %v310 = vmul.f32 %v185, %v228
  %v311 = vmul.f32 %v185, %v232
  %v312 = vmul.f32 %v185, %v236
  %v313 = vmul.f32 %v185, %v240
  %v314 = vmul.f32 %v185, %v244
  %v315 = vmul.f32 %v185, %v248
  %v316 = vmul.f32 %v185, %v252
  %v317 = vadd.f32 %v127, %v269
  %v318 = vadd.f32 %v128, %v270
  %v319 = vadd.f32 %v129, %v271
  %v320 = vadd.f32 %v130, %v272
  %v321 = vadd.f32 %v131, %v273
  %v322 = vadd.f32 %v132, %v274
  %v323 = vadd.f32 %v133, %v275
  %v324 = vadd.f32 %v134, %v276
  %v325 = vadd.f32 %v135, %v277
  %v326 = vadd.f32 %v136, %v278
  %v327 = vadd.f32 %v137, %v279
  %v328 = vadd.f32 %v138, %v280
  %v329 = vadd.f32 %v139, %v281
  %v330 = vadd.f32 %v140, %v282
  %v331 = vadd.f32 %v141, %v283
  %v332 = vadd.f32 %v142, %v284
  %v333 = vadd.f32 %v143, %v285
  %v334 = vadd.f32 %v144, %v286
  %v335 = vadd.f32 %v145, %v287
  %v336 = vadd.f32 %v146, %v288
  %v337 = vadd.f32 %v147, %v289
  %v338 = vadd.f32 %v148, %v290
  %v339 = vadd.f32 %v149, %v291
  %v340 = vadd.f32 %v150, %v292
  %v341 = vadd.f32 %v151, %v293
  %v342 = vadd.f32 %v152, %v294
  %v343 = vadd.f32 %v153, %v295
  %v344 = vadd.f32 %v154, %v296
  %v345 = vadd.f32 %v155, %v297
  %v346 = vadd.f32 %v156, %v298
  %v347 = vadd.f32 %v157, %v299
  %v348 = vadd.f32 %v158, %v300
  %v349 = vadd.f32 %v159, %v301
  %v350 = vadd.f32 %v160, %v302
  %v351 = vadd.f32 %v161, %v303
  %v352 = vadd.f32 %v162, %v304
  %v353 = vadd.f32 %v163, %v305
  %v354 = vadd.f32 %v164, %v306
  %v355 = vadd.f32 %v165, %v307
  %v356 = vadd.f32 %v166, %v308
  %v357 = vadd.f32 %v167, %v309
  %v358 = vadd.f32 %v168, %v310
  %v359 = vadd.f32 %v169, %v311
  %v360 = vadd.f32 %v170, %v312
  %v361 = vadd.f32 %v171, %v313
  %v362 = vadd.f32 %v172, %v314
  %v363 = vadd.f32 %v173, %v315
  %v364 = vadd.f32 %v174, %v316
  %365 = vset.pattern.permute.xlu0 2
  %366 = vperm.xlu0 %365, %v27
  %v367 = vpop.permute.xlu0 %366
  %369 = vset.pattern.permute.xlu0 2
  %370 = vperm.xlu0 %369, %v28
  %v371 = vpop.permute.xlu0 %370
  %373 = vset.pattern.permute.xlu0 2
  %374 = vperm.xlu0 %373, %v29
  %v375 = vpop.permute.xlu0 %374
  %v377 = vadd.f32 %v317, %v367
  %v378 = vadd.f32 %v318, %v367
  %v379 = vadd.f32 %v319, %v367
  %v380 = vadd.f32 %v320, %v367
  %v381 = vadd.f32 %v321, %v367
  %v382 = vadd.f32 %v322, %v367
  %v383 = vadd.f32 %v323, %v367
  %v384 = vadd.f32 %v324, %v367
  %v385 = vadd.f32 %v325, %v367
  %v386 = vadd.f32 %v326, %v367
  %v387 = vadd.f32 %v327, %v367
  %v388 = vadd.f32 %v328, %v367
  %v389 = vadd.f32 %v329, %v367
  %v390 = vadd.f32 %v330, %v367
  %v391 = vadd.f32 %v331, %v367
  %v392 = vadd.f32 %v332, %v367
  %v393 = vadd.f32 %v333, %v371
  %v394 = vadd.f32 %v334, %v371
  %v395 = vadd.f32 %v335, %v371
  %v396 = vadd.f32 %v336, %v371
  %v397 = vadd.f32 %v337, %v371
  %v398 = vadd.f32 %v338, %v371
  %v399 = vadd.f32 %v339, %v371
  %v400 = vadd.f32 %v340, %v371
  %v401 = vadd.f32 %v341, %v371
  %v402 = vadd.f32 %v342, %v371
  %v403 = vadd.f32 %v343, %v371
  %v404 = vadd.f32 %v344, %v371
  %v405 = vadd.f32 %v345, %v371
  %v406 = vadd.f32 %v346, %v371
  %v407 = vadd.f32 %v347, %v371
  %v408 = vadd.f32 %v348, %v371
  %v409 = vadd.f32 %v349, %v375
  %v410 = vadd.f32 %v350, %v375
  %v411 = vadd.f32 %v351, %v375
  %v412 = vadd.f32 %v352, %v375
  %v413 = vadd.f32 %v353, %v375
  %v414 = vadd.f32 %v354, %v375
  %v415 = vadd.f32 %v355, %v375
  %v416 = vadd.f32 %v356, %v375
  %v417 = vadd.f32 %v357, %v375
  %v418 = vadd.f32 %v358, %v375
  %v419 = vadd.f32 %v359, %v375
  %v420 = vadd.f32 %v360, %v375
  %v421 = vadd.f32 %v361, %v375
  %v422 = vadd.f32 %v362, %v375
  %v423 = vadd.f32 %v363, %v375
  %v424 = vadd.f32 %v364, %v375
  %v425 = vtanh.pop %v377
  %v426 = vtanh.pop %v378
  %v427 = vtanh.pop %v379
  %v428 = vtanh.pop %v380
  %v429 = vtanh.pop %v381
  %v430 = vtanh.pop %v382
  %v431 = vtanh.pop %v383
  %v432 = vtanh.pop %v384
  %v433 = vtanh.pop %v385
  %v434 = vtanh.pop %v386
  %v435 = vtanh.pop %v387
  %v436 = vtanh.pop %v388
  %v437 = vtanh.pop %v389
  %v438 = vtanh.pop %v390
  %v439 = vtanh.pop %v391
  %v440 = vtanh.pop %v392
  %v441 = vtanh.pop %v393
  %v442 = vtanh.pop %v394
  %v443 = vtanh.pop %v395
  %v444 = vtanh.pop %v396
  %v445 = vtanh.pop %v397
  %v446 = vtanh.pop %v398
  %v447 = vtanh.pop %v399
  %v448 = vtanh.pop %v400
  %v449 = vtanh.pop %v401
  %v450 = vtanh.pop %v402
  %v451 = vtanh.pop %v403
  %v452 = vtanh.pop %v404
  %v453 = vtanh.pop %v405
  %v454 = vtanh.pop %v406
  %v455 = vtanh.pop %v407
  %v456 = vtanh.pop %v408
  %v457 = vtanh.pop %v409
  %v458 = vtanh.pop %v410
  %v459 = vtanh.pop %v411
  %v460 = vtanh.pop %v412
  %v461 = vtanh.pop %v413
  %v462 = vtanh.pop %v414
  %v463 = vtanh.pop %v415
  %v464 = vtanh.pop %v416
  %v465 = vtanh.pop %v417
  %v466 = vtanh.pop %v418
  %v467 = vtanh.pop %v419
  %v468 = vtanh.pop %v420
  %v469 = vtanh.pop %v421
  %v470 = vtanh.pop %v422
  %v471 = vtanh.pop %v423
  %v472 = vtanh.pop %v424
  %v473 = vld [vmem:[%s2] sm:$0xff]
  %v474 = vld [vmem:[%s2 + $0x8] sm:$0xff]
  %v475 = vld [vmem:[%s2 + $0x10] sm:$0xf]
  %477 = vset.pattern.permute.xlu0 20
  %478 = vperm.xlu0 %477, %v473
  %v479 = vpop.permute.xlu0 %478
  %482 = vset.pattern.permute.xlu0 20
  %483 = vperm.xlu0 %482, %v474
  %v484 = vpop.permute.xlu0 %483
  %487 = vset.pattern.permute.xlu0 20
  %488 = vperm.xlu0 %487, %v475
  %v489 = vpop.permute.xlu0 %488
  %vm491 = vcmask 162816
  %v492 = vsel %vm491, %v473, 0
  %v494 = vsel %vm491, %v474, 0
  %v496 = vsel %vm491, %v475, 0
  %vm498 = vcmask 1043456
  %v500 = vsel %vm498, %v457, 0
  %v503 = vsel %vm498, %v458, 0
  %v506 = vsel %vm498, %v459, 0
  %v509 = vsel %vm498, %v460, 0
  %v512 = vsel %vm498, %v461, 0
  %v515 = vsel %vm498, %v462, 0
  %v518 = vsel %vm498, %v463, 0
  %v521 = vsel %vm498, %v464, 0
  %v524 = vsel %vm498, %v465, 0
  %v527 = vsel %vm498, %v466, 0
  %v530 = vsel %vm498, %v467, 0
  %v533 = vsel %vm498, %v468, 0
  %v536 = vsel %vm498, %v469, 0
  %v539 = vsel %vm498, %v470, 0
  %v542 = vsel %vm498, %v471, 0
  %v545 = vsel %vm498, %v472, 0
  %547 = vmatprep.subr.mxu0 %v426
  %548 = vmatpush1.msra.mxu0 %v425
  %549 = vmatprep.subr.mxu0 %v442
  %550 = vmatpush1.msra.mxu0 %v441
  %551 = vmatprep.subr.mxu0 %v503
  %552 = vmatpush1.msra.mxu0 %v500
  %553 = vmatprep.subr.mxu0 0.0
  %554 = vmatpush1.msra.mxu0 0.0
  %555 = vmatprep.subr.mxu0 0.0
  %556 = vmatpush1.msra.mxu0 0.0
  %557 = vmatprep.subr.mxu0 0.0
  %558 = vmatpush1.msra.mxu0 0.0
  %559 = vmatprep.subr.mxu0 0.0
  %560 = vmatpush1.msra.mxu0 0.0
  %561 = vmatprep.subr.mxu0 0.0
  %562 = vmatpush1.msra.mxu0 0.0
  %563 = vmatprep.subr.mxu0 0.0
  %564 = vmatpush1.msra.mxu0 0.0
  %565 = vmatprep.subr.mxu0 0.0
  %566 = vmatpush1.msra.mxu0 0.0
  %567 = vmatprep.subr.mxu0 0.0
  %568 = vmatpush1.msra.mxu0 0.0
  %569 = vmatprep.subr.mxu0 0.0
  %570 = vmatpush1.msra.mxu0 0.0
  %571 = vmatprep.subr.mxu0 0.0
  %572 = vmatpush1.msra.mxu0 0.0
  %573 = vmatprep.subr.mxu0 0.0
  %574 = vmatpush1.msra.mxu0 0.0
  %575 = vmatprep.subr.mxu0 0.0
  %576 = vmatpush1.msra.mxu0 0.0
  %577 = vmatprep.subr.mxu0 0.0
  %578 = vmatpush1.msra.mxu0 0.0
  %579 = vmatprep.subr.mxu0 0.0
  %580 = vmatpush1.msra.mxu0 0.0
  %581 = vmatprep.subr.mxu0 0.0
  %582 = vmatpush1.msra.mxu0 0.0
  %583 = vmatprep.subr.mxu0 0.0
  %584 = vmatpush1.msra.mxu0 0.0
  %585 = vmatprep.subr.mxu0 0.0
  %586 = vmatpush1.msra.mxu0 0.0
  %587 = vmatprep.subr.mxu0 0.0
  %588 = vmatpush1.msra.mxu0 0.0
  %589 = vmatprep.subr.mxu0 0.0
  %590 = vmatpush1.msra.mxu0 0.0
  %591 = vmatprep.subr.mxu0 0.0
  %592 = vmatpush1.msra.mxu0 0.0
  %593 = vmatprep.subr.mxu0 0.0
  %594 = vmatpush1.msra.mxu0 0.0
  %595 = vmatprep.subr.mxu0 0.0
  %596 = vmatpush1.msra.mxu0 0.0
  %597 = vmatprep.subr.mxu0 0.0
  %598 = vmatpush1.msra.mxu0 0.0
  %599 = vmatprep.subr.mxu0 0.0
  %600 = vmatpush1.msra.mxu0 0.0
  %601 = vmatprep.subr.mxu0 0.0
  %602 = vmatpush1.msra.mxu0 0.0
  %603 = vmatprep.subr.mxu0 0.0
  %604 = vmatpush1.msra.mxu0 0.0
  %605 = vmatprep.subr.mxu0 0.0
  %606 = vmatpush1.msra.mxu0 0.0
  %607 = vmatprep.subr.mxu0 0.0
  %608 = vmatpush1.msra.mxu0 0.0
  %609 = vmatprep.subr.mxu0 0.0
  %610 = vmatpush1.msra.mxu0 0.0
  %611 = vmatprep.mubr.f32.mxu0 0.0
  %612 = vmatmul.mubr.f32.gmra.mrb[0].mxu0 %v492
  %v613 = vpop.f32.mrb[0].mxu0
  %v614 = vadd.f32 %v479, %v613
  %v615 = vpop.f32.mrb[0].mxu0
  %v616 = vadd.f32 %v479, %v615
  %617 = vmatprep.mubr.f32.mxu0 0.0
  %618 = vmatmul.mubr.f32.gmra.mrb[0].mxu0 %v494
  %v619 = vpop.f32.mrb[0].mxu0
  %v620 = vadd.f32 %v484, %v619
  %v621 = vpop.f32.mrb[0].mxu0
  %v622 = vadd.f32 %v484, %v621
  %623 = vmatprep.mubr.f32.mxu0 0.0
  %624 = vmatmul.mubr.f32.gmra.mrb[0].mxu0 %v496
  %v625 = vpop.f32.mrb[0].mxu0
  %v626 = vadd.f32 %v489, %v625
  %v627 = vpop.f32.mrb[0].mxu0
  %v628 = vadd.f32 %v489, %v627
  %629 = vdwg.mxu0
  %630 = vmatprep.subr.mxu0 %v428
  %631 = vmatpush1.msra.mxu0 %v427
  %632 = vmatprep.subr.mxu0 %v444
  %633 = vmatpush1.msra.mxu0 %v443
  %634 = vmatprep.subr.mxu0 %v509
  %635 = vmatpush1.msra.mxu0 %v506
  %636 = vmatprep.subr.mxu0 0.0
  %637 = vmatpush1.msra.mxu0 0.0
  %638 = vmatprep.subr.mxu0 0.0
  %639 = vmatpush1.msra.mxu0 0.0
  %640 = vmatprep.subr.mxu0 0.0
  %641 = vmatpush1.msra.mxu0 0.0
  %642 = vmatprep.subr.mxu0 0.0
  %643 = vmatpush1.msra.mxu0 0.0
  %644 = vmatprep.subr.mxu0 0.0
  %645 = vmatpush1.msra.mxu0 0.0
  %646 = vmatprep.subr.mxu0 0.0
  %647 = vmatpush1.msra.mxu0 0.0
  %648 = vmatprep.subr.mxu0 0.0
  %649 = vmatpush1.msra.mxu0 0.0
  %650 = vmatprep.subr.mxu0 0.0
  %651 = vmatpush1.msra.mxu0 0.0
  %652 = vmatprep.subr.mxu0 0.0
  %653 = vmatpush1.msra.mxu0 0.0
  %654 = vmatprep.subr.mxu0 0.0
  %655 = vmatpush1.msra.mxu0 0.0
  %656 = vmatprep.subr.mxu0 0.0
  %657 = vmatpush1.msra.mxu0 0.0
  %658 = vmatprep.subr.mxu0 0.0
  %659 = vmatpush1.msra.mxu0 0.0
  %660 = vmatprep.subr.mxu0 0.0
  %661 = vmatpush1.msra.mxu0 0.0
  %662 = vmatprep.subr.mxu0 0.0
  %663 = vmatpush1.msra.mxu0 0.0
  %664 = vmatprep.subr.mxu0 0.0
  %665 = vmatpush1.msra.mxu0 0.0
  %666 = vmatprep.subr.mxu0 0.0
  %667 = vmatpush1.msra.mxu0 0.0
  %668 = vmatprep.subr.mxu0 0.0
  %669 = vmatpush1.msra.mxu0 0.0
  %670 = vmatprep.subr.mxu0 0.0
  %671 = vmatpush1.msra.mxu0 0.0
  %672 = vmatprep.subr.mxu0 0.0
  %673 = vmatpush1.msra.mxu0 0.0
  %674 = vmatprep.subr.mxu0 0.0
  %675 = vmatpush1.msra.mxu0 0.0
  %676 = vmatprep.subr.mxu0 0.0
  %677 = vmatpush1.msra.mxu0 0.0
  %678 = vmatprep.subr.mxu0 0.0
  %679 = vmatpush1.msra.mxu0 0.0
  %680 = vmatprep.subr.mxu0 0.0
  %681 = vmatpush1.msra.mxu0 0.0
  %682 = vmatprep.subr.mxu0 0.0
  %683 = vmatpush1.msra.mxu0 0.0
  %684 = vmatprep.subr.mxu0 0.0
  %685 = vmatpush1.msra.mxu0 0.0
  %686 = vmatprep.subr.mxu0 0.0
  %687 = vmatpush1.msra.mxu0 0.0
  %688 = vmatprep.subr.mxu0 0.0
  %689 = vmatpush1.msra.mxu0 0.0
  %690 = vmatprep.subr.mxu0 0.0
  %691 = vmatpush1.msra.mxu0 0.0
  %692 = vmatprep.subr.mxu0 0.0
  %693 = vmatpush1.msra.mxu0 0.0
  %694 = vmatprep.mubr.f32.mxu0 0.0
  %695 = vmatmul.mubr.f32.gmra.mrb[0].mxu0 %v492
  %v696 = vpop.f32.mrb[0].mxu0
  %v697 = vadd.f32 %v479, %v696
  %v698 = vpop.f32.mrb[0].mxu0
  %v699 = vadd.f32 %v479, %v698
  %700 = vmatprep.mubr.f32.mxu0 0.0
  %701 = vmatmul.mubr.f32.gmra.mrb[0].mxu0 %v494
  %v702 = vpop.f32.mrb[0].mxu0
  %v703 = vadd.f32 %v484, %v702
  %v704 = vpop.f32.mrb[0].mxu0
  %v705 = vadd.f32 %v484, %v704
  %706 = vmatprep.mubr.f32.mxu0 0.0
  %707 = vmatmul.mubr.f32.gmra.mrb[0].mxu0 %v496
  %v708 = vpop.f32.mrb[0].mxu0
  %v709 = vadd.f32 %v489, %v708
  %v710 = vpop.f32.mrb[0].mxu0
  %v711 = vadd.f32 %v489, %v710
  %712 = vdwg.mxu0
  %713 = vmatprep.subr.mxu0 %v430
  %714 = vmatpush1.msra.mxu0 %v429
  %715 = vmatprep.subr.mxu0 %v446
  %716 = vmatpush1.msra.mxu0 %v445
  %717 = vmatprep.subr.mxu0 %v515
  %718 = vmatpush1.msra.mxu0 %v512
  %719 = vmatprep.subr.mxu0 0.0
  %720 = vmatpush1.msra.mxu0 0.0
  %721 = vmatprep.subr.mxu0 0.0
  %722 = vmatpush1.msra.mxu0 0.0
  %723 = vmatprep.subr.mxu0 0.0
  %724 = vmatpush1.msra.mxu0 0.0
  %725 = vmatprep.subr.mxu0 0.0
  %726 = vmatpush1.msra.mxu0 0.0
  %727 = vmatprep.subr.mxu0 0.0
  %728 = vmatpush1.msra.mxu0 0.0
  %729 = vmatprep.subr.mxu0 0.0
  %730 = vmatpush1.msra.mxu0 0.0
  %731 = vmatprep.subr.mxu0 0.0
  %732 = vmatpush1.msra.mxu0 0.0
  %733 = vmatprep.subr.mxu0 0.0
  %734 = vmatpush1.msra.mxu0 0.0
  %735 = vmatprep.subr.mxu0 0.0
  %736 = vmatpush1.msra.mxu0 0.0
  %737 = vmatprep.subr.mxu0 0.0
  %738 = vmatpush1.msra.mxu0 0.0
  %739 = vmatprep.subr.mxu0 0.0
  %740 = vmatpush1.msra.mxu0 0.0
  %741 = vmatprep.subr.mxu0 0.0
  %742 = vmatpush1.msra.mxu0 0.0
  %743 = vmatprep.subr.mxu0 0.0
  %744 = vmatpush1.msra.mxu0 0.0
  %745 = vmatprep.subr.mxu0 0.0
  %746 = vmatpush1.msra.mxu0 0.0
  %747 = vmatprep.subr.mxu0 0.0
  %748 = vmatpush1.msra.mxu0 0.0
  %749 = vmatprep.subr.mxu0 0.0
  %750 = vmatpush1.msra.mxu0 0.0
  %751 = vmatprep.subr.mxu0 0.0
  %752 = vmatpush1.msra.mxu0 0.0
  %753 = vmatprep.subr.mxu0 0.0
  %754 = vmatpush1.msra.mxu0 0.0
  %755 = vmatprep.subr.mxu0 0.0
  %756 = vmatpush1.msra.mxu0 0.0
  %757 = vmatprep.subr.mxu0 0.0
  %758 = vmatpush1.msra.mxu0 0.0
  %759 = vmatprep.subr.mxu0 0.0
  %760 = vmatpush1.msra.mxu0 0.0
  %761 = vmatprep.subr.mxu0 0.0
  %762 = vmatpush1.msra.mxu0 0.0
  %763 = vmatprep.subr.mxu0 0.0
  %764 = vmatpush1.msra.mxu0 0.0
  %765 = vmatprep.subr.mxu0 0.0
  %766 = vmatpush1.msra.mxu0 0.0
  %767 = vmatprep.subr.mxu0 0.0
  %768 = vmatpush1.msra.mxu0 0.0
  %769 = vmatprep.subr.mxu0 0.0
  %770 = vmatpush1.msra.mxu0 0.0
  %771 = vmatprep.subr.mxu0 0.0
  %772 = vmatpush1.msra.mxu0 0.0
  %773 = vmatprep.subr.mxu0 0.0
  %774 = vmatpush1.msra.mxu0 0.0
  %775 = vmatprep.subr.mxu0 0.0
  %776 = vmatpush1.msra.mxu0 0.0
  %777 = vmatprep.mubr.f32.mxu0 0.0
  %778 = vmatmul.mubr.f32.gmra.mrb[0].mxu0 %v492
  %v779 = vpop.f32.mrb[0].mxu0
  %v780 = vadd.f32 %v479, %v779
  %v781 = vpop.f32.mrb[0].mxu0
  %v782 = vadd.f32 %v479, %v781
  %783 = vmatprep.mubr.f32.mxu0 0.0
  %784 = vmatmul.mubr.f32.gmra.mrb[0].mxu0 %v494
  %v785 = vpop.f32.mrb[0].mxu0
  %v786 = vadd.f32 %v484, %v785
  %v787 = vpop.f32.mrb[0].mxu0
  %v788 = vadd.f32 %v484, %v787
  %789 = vmatprep.mubr.f32.mxu0 0.0
  %790 = vmatmul.mubr.f32.gmra.mrb[0].mxu0 %v496
  %v791 = vpop.f32.mrb[0].mxu0
  %v792 = vadd.f32 %v489, %v791
  %v793 = vpop.f32.mrb[0].mxu0
  %v794 = vadd.f32 %v489, %v793
  %795 = vdwg.mxu0
  %796 = vmatprep.subr.mxu0 %v432
  %797 = vmatpush1.msra.mxu0 %v431
  %798 = vmatprep.subr.mxu0 %v448
  %799 = vmatpush1.msra.mxu0 %v447
  %800 = vmatprep.subr.mxu0 %v521
  %801 = vmatpush1.msra.mxu0 %v518
  %802 = vmatprep.subr.mxu0 0.0
  %803 = vmatpush1.msra.mxu0 0.0
  %804 = vmatprep.subr.mxu0 0.0
  %805 = vmatpush1.msra.mxu0 0.0
  %806 = vmatprep.subr.mxu0 0.0
  %807 = vmatpush1.msra.mxu0 0.0
  %808 = vmatprep.subr.mxu0 0.0
  %809 = vmatpush1.msra.mxu0 0.0
  %810 = vmatprep.subr.mxu0 0.0
  %811 = vmatpush1.msra.mxu0 0.0
  %812 = vmatprep.subr.mxu0 0.0
  %813 = vmatpush1.msra.mxu0 0.0
  %814 = vmatprep.subr.mxu0 0.0
  %815 = vmatpush1.msra.mxu0 0.0
  %816 = vmatprep.subr.mxu0 0.0
  %817 = vmatpush1.msra.mxu0 0.0
  %818 = vmatprep.subr.mxu0 0.0
  %819 = vmatpush1.msra.mxu0 0.0
  %820 = vmatprep.subr.mxu0 0.0
  %821 = vmatpush1.msra.mxu0 0.0
  %822 = vmatprep.subr.mxu0 0.0
  %823 = vmatpush1.msra.mxu0 0.0
  %824 = vmatprep.subr.mxu0 0.0
  %825 = vmatpush1.msra.mxu0 0.0
  %826 = vmatprep.subr.mxu0 0.0
  %827 = vmatpush1.msra.mxu0 0.0
  %828 = vmatprep.subr.mxu0 0.0
  %829 = vmatpush1.msra.mxu0 0.0
  %830 = vmatprep.subr.mxu0 0.0
  %831 = vmatpush1.msra.mxu0 0.0
  %832 = vmatprep.subr.mxu0 0.0
  %833 = vmatpush1.msra.mxu0 0.0
  %834 = vmatprep.subr.mxu0 0.0
  %835 = vmatpush1.msra.mxu0 0.0
  %836 = vmatprep.subr.mxu0 0.0
  %837 = vmatpush1.msra.mxu0 0.0
  %838 = vmatprep.subr.mxu0 0.0
  %839 = vmatpush1.msra.mxu0 0.0
  %840 = vmatprep.subr.mxu0 0.0
  %841 = vmatpush1.msra.mxu0 0.0
  %842 = vmatprep.subr.mxu0 0.0
  %843 = vmatpush1.msra.mxu0 0.0
  %844 = vmatprep.subr.mxu0 0.0
  %845 = vmatpush1.msra.mxu0 0.0
  %846 = vmatprep.subr.mxu0 0.0
  %847 = vmatpush1.msra.mxu0 0.0
  %848 = vmatprep.subr.mxu0 0.0
  %849 = vmatpush1.msra.mxu0 0.0
  %850 = vmatprep.subr.mxu0 0.0
  %851 = vmatpush1.msra.mxu0 0.0
  %852 = vmatprep.subr.mxu0 0.0
  %853 = vmatpush1.msra.mxu0 0.0
  %854 = vmatprep.subr.mxu0 0.0
  %855 = vmatpush1.msra.mxu0 0.0
  %856 = vmatprep.subr.mxu0 0.0
  %857 = vmatpush1.msra.mxu0 0.0
  %858 = vmatprep.subr.mxu0 0.0
  %859 = vmatpush1.msra.mxu0 0.0
  %860 = vmatprep.mubr.f32.mxu0 0.0
  %861 = vmatmul.mubr.f32.gmra.mrb[0].mxu0 %v492
  %v862 = vpop.f32.mrb[0].mxu0
  %v863 = vadd.f32 %v479, %v862
  %v864 = vpop.f32.mrb[0].mxu0
  %v865 = vadd.f32 %v479, %v864
  %866 = vmatprep.mubr.f32.mxu0 0.0
  %867 = vmatmul.mubr.f32.gmra.mrb[0].mxu0 %v494
  %v868 = vpop.f32.mrb[0].mxu0
  %v869 = vadd.f32 %v484, %v868
  %v870 = vpop.f32.mrb[0].mxu0
  %v871 = vadd.f32 %v484, %v870
  %872 = vmatprep.mubr.f32.mxu0 0.0
  %873 = vmatmul.mubr.f32.gmra.mrb[0].mxu0 %v496
  %v874 = vpop.f32.mrb[0].mxu0
  %v875 = vadd.f32 %v489, %v874
  %v876 = vpop.f32.mrb[0].mxu0
  %v877 = vadd.f32 %v489, %v876
  %878 = vdwg.mxu0
  %879 = vmatprep.subr.mxu0 %v434
  %880 = vmatpush1.msra.mxu0 %v433
  %881 = vmatprep.subr.mxu0 %v450
  %882 = vmatpush1.msra.mxu0 %v449
  %883 = vmatprep.subr.mxu0 %v527
  %884 = vmatpush1.msra.mxu0 %v524
  %885 = vmatprep.subr.mxu0 0.0
  %886 = vmatpush1.msra.mxu0 0.0
  %887 = vmatprep.subr.mxu0 0.0
  %888 = vmatpush1.msra.mxu0 0.0
  %889 = vmatprep.subr.mxu0 0.0
  %890 = vmatpush1.msra.mxu0 0.0
  %891 = vmatprep.subr.mxu0 0.0
  %892 = vmatpush1.msra.mxu0 0.0
  %893 = vmatprep.subr.mxu0 0.0
  %894 = vmatpush1.msra.mxu0 0.0
  %895 = vmatprep.subr.mxu0 0.0
  %896 = vmatpush1.msra.mxu0 0.0
  %897 = vmatprep.subr.mxu0 0.0
  %898 = vmatpush1.msra.mxu0 0.0
  %899 = vmatprep.subr.mxu0 0.0
  %900 = vmatpush1.msra.mxu0 0.0
  %901 = vmatprep.subr.mxu0 0.0
  %902 = vmatpush1.msra.mxu0 0.0
  %903 = vmatprep.subr.mxu0 0.0
  %904 = vmatpush1.msra.mxu0 0.0
  %905 = vmatprep.subr.mxu0 0.0
  %906 = vmatpush1.msra.mxu0 0.0
  %907 = vmatprep.subr.mxu0 0.0
  %908 = vmatpush1.msra.mxu0 0.0
  %909 = vmatprep.subr.mxu0 0.0
  %910 = vmatpush1.msra.mxu0 0.0
  %911 = vmatprep.subr.mxu0 0.0
  %912 = vmatpush1.msra.mxu0 0.0
  %913 = vmatprep.subr.mxu0 0.0
  %914 = vmatpush1.msra.mxu0 0.0
  %915 = vmatprep.subr.mxu0 0.0
  %916 = vmatpush1.msra.mxu0 0.0
  %917 = vmatprep.subr.mxu0 0.0
  %918 = vmatpush1.msra.mxu0 0.0
  %919 = vmatprep.subr.mxu0 0.0
  %920 = vmatpush1.msra.mxu0 0.0
  %921 = vmatprep.subr.mxu0 0.0
  %922 = vmatpush1.msra.mxu0 0.0
  %923 = vmatprep.subr.mxu0 0.0
  %924 = vmatpush1.msra.mxu0 0.0
  %925 = vmatprep.subr.mxu0 0.0
  %926 = vmatpush1.msra.mxu0 0.0
  %927 = vmatprep.subr.mxu0 0.0
  %928 = vmatpush1.msra.mxu0 0.0
  %929 = vmatprep.subr.mxu0 0.0
  %930 = vmatpush1.msra.mxu0 0.0
  %931 = vmatprep.subr.mxu0 0.0
  %932 = vmatpush1.msra.mxu0 0.0
  %933 = vmatprep.subr.mxu0 0.0
  %934 = vmatpush1.msra.mxu0 0.0
  %935 = vmatprep.subr.mxu0 0.0
  %936 = vmatpush1.msra.mxu0 0.0
  %937 = vmatprep.subr.mxu0 0.0
  %938 = vmatpush1.msra.mxu0 0.0
  %939 = vmatprep.subr.mxu0 0.0
  %940 = vmatpush1.msra.mxu0 0.0
  %941 = vmatprep.subr.mxu0 0.0
  %942 = vmatpush1.msra.mxu0 0.0
  %943 = vmatprep.mubr.f32.mxu0 0.0
  %944 = vmatmul.mubr.f32.gmra.mrb[0].mxu0 %v492
  %v945 = vpop.f32.mrb[0].mxu0
  %v946 = vadd.f32 %v479, %v945
  %v947 = vpop.f32.mrb[0].mxu0
  %v948 = vadd.f32 %v479, %v947
  %949 = vmatprep.mubr.f32.mxu0 0.0
  %950 = vmatmul.mubr.f32.gmra.mrb[0].mxu0 %v494
  %v951 = vpop.f32.mrb[0].mxu0
  %v952 = vadd.f32 %v484, %v951
  %v953 = vpop.f32.mrb[0].mxu0
  %v954 = vadd.f32 %v484, %v953
  %955 = vmatprep.mubr.f32.mxu0 0.0
  %956 = vmatmul.mubr.f32.gmra.mrb[0].mxu0 %v496
  %v957 = vpop.f32.mrb[0].mxu0
  %v958 = vadd.f32 %v489, %v957
  %v959 = vpop.f32.mrb[0].mxu0
  %v960 = vadd.f32 %v489, %v959
  %961 = vdwg.mxu0
  %962 = vmatprep.subr.mxu0 %v436
  %963 = vmatpush1.msra.mxu0 %v435
  %964 = vmatprep.subr.mxu0 %v452
  %965 = vmatpush1.msra.mxu0 %v451
  %966 = vmatprep.subr.mxu0 %v533
  %967 = vmatpush1.msra.mxu0 %v530
  %968 = vmatprep.subr.mxu0 0.0
  %969 = vmatpush1.msra.mxu0 0.0
  %970 = vmatprep.subr.mxu0 0.0
  %971 = vmatpush1.msra.mxu0 0.0
  %972 = vmatprep.subr.mxu0 0.0
  %973 = vmatpush1.msra.mxu0 0.0
  %974 = vmatprep.subr.mxu0 0.0
  %975 = vmatpush1.msra.mxu0 0.0
  %976 = vmatprep.subr.mxu0 0.0
  %977 = vmatpush1.msra.mxu0 0.0
  %978 = vmatprep.subr.mxu0 0.0
  %979 = vmatpush1.msra.mxu0 0.0
  %980 = vmatprep.subr.mxu0 0.0
  %981 = vmatpush1.msra.mxu0 0.0
  %982 = vmatprep.subr.mxu0 0.0
  %983 = vmatpush1.msra.mxu0 0.0
  %984 = vmatprep.subr.mxu0 0.0
  %985 = vmatpush1.msra.mxu0 0.0
  %986 = vmatprep.subr.mxu0 0.0
  %987 = vmatpush1.msra.mxu0 0.0
  %988 = vmatprep.subr.mxu0 0.0
  %989 = vmatpush1.msra.mxu0 0.0
  %990 = vmatprep.subr.mxu0 0.0
  %991 = vmatpush1.msra.mxu0 0.0
  %992 = vmatprep.subr.mxu0 0.0
  %993 = vmatpush1.msra.mxu0 0.0
  %994 = vmatprep.subr.mxu0 0.0
  %995 = vmatpush1.msra.mxu0 0.0
  %996 = vmatprep.subr.mxu0 0.0
  %997 = vmatpush1.msra.mxu0 0.0
  %998 = vmatprep.subr.mxu0 0.0
  %999 = vmatpush1.msra.mxu0 0.0
  %1000 = vmatprep.subr.mxu0 0.0
  %1001 = vmatpush1.msra.mxu0 0.0
  %1002 = vmatprep.subr.mxu0 0.0
  %1003 = vmatpush1.msra.mxu0 0.0
  %1004 = vmatprep.subr.mxu0 0.0
  %1005 = vmatpush1.msra.mxu0 0.0
  %1006 = vmatprep.subr.mxu0 0.0
  %1007 = vmatpush1.msra.mxu0 0.0
  %1008 = vmatprep.subr.mxu0 0.0
  %1009 = vmatpush1.msra.mxu0 0.0
  %1010 = vmatprep.subr.mxu0 0.0
  %1011 = vmatpush1.msra.mxu0 0.0
  %1012 = vmatprep.subr.mxu0 0.0
  %1013 = vmatpush1.msra.mxu0 0.0
  %1014 = vmatprep.subr.mxu0 0.0
  %1015 = vmatpush1.msra.mxu0 0.0
  %1016 = vmatprep.subr.mxu0 0.0
  %1017 = vmatpush1.msra.mxu0 0.0
  %1018 = vmatprep.subr.mxu0 0.0
  %1019 = vmatpush1.msra.mxu0 0.0
  %1020 = vmatprep.subr.mxu0 0.0
  %1021 = vmatpush1.msra.mxu0 0.0
  %1022 = vmatprep.subr.mxu0 0.0
  %1023 = vmatpush1.msra.mxu0 0.0
  %1024 = vmatprep.subr.mxu0 0.0
  %1025 = vmatpush1.msra.mxu0 0.0
  %1026 = vmatprep.mubr.f32.mxu0 0.0
  %1027 = vmatmul.mubr.f32.gmra.mrb[0].mxu0 %v492
  %v1028 = vpop.f32.mrb[0].mxu0
  %v1029 = vadd.f32 %v479, %v1028
  %v1030 = vpop.f32.mrb[0].mxu0
  %v1031 = vadd.f32 %v479, %v1030
  %1032 = vmatprep.mubr.f32.mxu0 0.0
  %1033 = vmatmul.mubr.f32.gmra.mrb[0].mxu0 %v494
  %v1034 = vpop.f32.mrb[0].mxu0
  %v1035 = vadd.f32 %v484, %v1034
  %v1036 = vpop.f32.mrb[0].mxu0
  %v1037 = vadd.f32 %v484, %v1036
  %1038 = vmatprep.mubr.f32.mxu0 0.0
  %1039 = vmatmul.mubr.f32.gmra.mrb[0].mxu0 %v496
  %v1040 = vpop.f32.mrb[0].mxu0
  %v1041 = vadd.f32 %v489, %v1040
  %v1042 = vpop.f32.mrb[0].mxu0
  %v1043 = vadd.f32 %v489, %v1042
  %1044 = vdwg.mxu0
  %1045 = vmatprep.subr.mxu0 %v438
  %1046 = vmatpush1.msra.mxu0 %v437
  %1047 = vmatprep.subr.mxu0 %v454
  %1048 = vmatpush1.msra.mxu0 %v453
  %1049 = vmatprep.subr.mxu0 %v539
  %1050 = vmatpush1.msra.mxu0 %v536
  %1051 = vmatprep.subr.mxu0 0.0
  %1052 = vmatpush1.msra.mxu0 0.0
  %1053 = vmatprep.subr.mxu0 0.0
  %1054 = vmatpush1.msra.mxu0 0.0
  %1055 = vmatprep.subr.mxu0 0.0
  %1056 = vmatpush1.msra.mxu0 0.0
  %1057 = vmatprep.subr.mxu0 0.0
  %1058 = vmatpush1.msra.mxu0 0.0
  %1059 = vmatprep.subr.mxu0 0.0
  %1060 = vmatpush1.msra.mxu0 0.0
  %1061 = vmatprep.subr.mxu0 0.0
  %1062 = vmatpush1.msra.mxu0 0.0
  %1063 = vmatprep.subr.mxu0 0.0
  %1064 = vmatpush1.msra.mxu0 0.0
  %1065 = vmatprep.subr.mxu0 0.0
  %1066 = vmatpush1.msra.mxu0 0.0
  %1067 = vmatprep.subr.mxu0 0.0
  %1068 = vmatpush1.msra.mxu0 0.0
  %1069 = vmatprep.subr.mxu0 0.0
  %1070 = vmatpush1.msra.mxu0 0.0
  %1071 = vmatprep.subr.mxu0 0.0
  %1072 = vmatpush1.msra.mxu0 0.0
  %1073 = vmatprep.subr.mxu0 0.0
  %1074 = vmatpush1.msra.mxu0 0.0
  %1075 = vmatprep.subr.mxu0 0.0
  %1076 = vmatpush1.msra.mxu0 0.0
  %1077 = vmatprep.subr.mxu0 0.0
  %1078 = vmatpush1.msra.mxu0 0.0
  %1079 = vmatprep.subr.mxu0 0.0
  %1080 = vmatpush1.msra.mxu0 0.0
  %1081 = vmatprep.subr.mxu0 0.0
  %1082 = vmatpush1.msra.mxu0 0.0
  %1083 = vmatprep.subr.mxu0 0.0
  %1084 = vmatpush1.msra.mxu0 0.0
  %1085 = vmatprep.subr.mxu0 0.0
  %1086 = vmatpush1.msra.mxu0 0.0
  %1087 = vmatprep.subr.mxu0 0.0
  %1088 = vmatpush1.msra.mxu0 0.0
  %1089 = vmatprep.subr.mxu0 0.0
  %1090 = vmatpush1.msra.mxu0 0.0
  %1091 = vmatprep.subr.mxu0 0.0
  %1092 = vmatpush1.msra.mxu0 0.0
  %1093 = vmatprep.subr.mxu0 0.0
  %1094 = vmatpush1.msra.mxu0 0.0
  %1095 = vmatprep.subr.mxu0 0.0
  %1096 = vmatpush1.msra.mxu0 0.0
  %1097 = vmatprep.subr.mxu0 0.0
  %1098 = vmatpush1.msra.mxu0 0.0
  %1099 = vmatprep.subr.mxu0 0.0
  %1100 = vmatpush1.msra.mxu0 0.0
  %1101 = vmatprep.subr.mxu0 0.0
  %1102 = vmatpush1.msra.mxu0 0.0
  %1103 = vmatprep.subr.mxu0 0.0
  %1104 = vmatpush1.msra.mxu0 0.0
  %1105 = vmatprep.subr.mxu0 0.0
  %1106 = vmatpush1.msra.mxu0 0.0
  %1107 = vmatprep.subr.mxu0 0.0
  %1108 = vmatpush1.msra.mxu0 0.0
  %1109 = vmatprep.mubr.f32.mxu0 0.0
  %1110 = vmatmul.mubr.f32.gmra.mrb[0].mxu0 %v492
  %v1111 = vpop.f32.mrb[0].mxu0
  %v1112 = vadd.f32 %v479, %v1111
  %v1113 = vpop.f32.mrb[0].mxu0
  %v1114 = vadd.f32 %v479, %v1113
  %1115 = vmatprep.mubr.f32.mxu0 0.0
  %1116 = vmatmul.mubr.f32.gmra.mrb[0].mxu0 %v494
  %v1117 = vpop.f32.mrb[0].mxu0
  %v1118 = vadd.f32 %v484, %v1117
  %v1119 = vpop.f32.mrb[0].mxu0
  %v1120 = vadd.f32 %v484, %v1119
  %1121 = vmatprep.mubr.f32.mxu0 0.0
  %1122 = vmatmul.mubr.f32.gmra.mrb[0].mxu0 %v496
  %v1123 = vpop.f32.mrb[0].mxu0
  %v1124 = vadd.f32 %v489, %v1123
  %v1125 = vpop.f32.mrb[0].mxu0
  %v1126 = vadd.f32 %v489, %v1125
  %1127 = vdwg.mxu0
  %1128 = vmatprep.subr.mxu0 %v440
  %1129 = vmatpush1.msra.mxu0 %v439
  %1130 = vmatprep.subr.mxu0 %v456
  %1131 = vmatpush1.msra.mxu0 %v455
  %1132 = vmatprep.subr.mxu0 %v545
  %1133 = vmatpush1.msra.mxu0 %v542
  %1134 = vmatprep.subr.mxu0 0.0
  %1135 = vmatpush1.msra.mxu0 0.0
  %1136 = vmatprep.subr.mxu0 0.0
  %1137 = vmatpush1.msra.mxu0 0.0
  %1138 = vmatprep.subr.mxu0 0.0
  %1139 = vmatpush1.msra.mxu0 0.0
  %1140 = vmatprep.subr.mxu0 0.0
  %1141 = vmatpush1.msra.mxu0 0.0
  %1142 = vmatprep.subr.mxu0 0.0
  %1143 = vmatpush1.msra.mxu0 0.0
  %1144 = vmatprep.subr.mxu0 0.0
  %1145 = vmatpush1.msra.mxu0 0.0
  %1146 = vmatprep.subr.mxu0 0.0
  %1147 = vmatpush1.msra.mxu0 0.0
  %1148 = vmatprep.subr.mxu0 0.0
  %1149 = vmatpush1.msra.mxu0 0.0
  %1150 = vmatprep.subr.mxu0 0.0
  %1151 = vmatpush1.msra.mxu0 0.0
  %1152 = vmatprep.subr.mxu0 0.0
  %1153 = vmatpush1.msra.mxu0 0.0
  %1154 = vmatprep.subr.mxu0 0.0
  %1155 = vmatpush1.msra.mxu0 0.0
  %1156 = vmatprep.subr.mxu0 0.0
  %1157 = vmatpush1.msra.mxu0 0.0
  %1158 = vmatprep.subr.mxu0 0.0
  %1159 = vmatpush1.msra.mxu0 0.0
  %1160 = vmatprep.subr.mxu0 0.0
  %1161 = vmatpush1.msra.mxu0 0.0
  %1162 = vmatprep.subr.mxu0 0.0
  %1163 = vmatpush1.msra.mxu0 0.0
  %1164 = vmatprep.subr.mxu0 0.0
  %1165 = vmatpush1.msra.mxu0 0.0
  %1166 = vmatprep.subr.mxu0 0.0
  %1167 = vmatpush1.msra.mxu0 0.0
  %1168 = vmatprep.subr.mxu0 0.0
  %1169 = vmatpush1.msra.mxu0 0.0
  %1170 = vmatprep.subr.mxu0 0.0
  %1171 = vmatpush1.msra.mxu0 0.0
  %1172 = vmatprep.subr.mxu0 0.0
  %1173 = vmatpush1.msra.mxu0 0.0
  %1174 = vmatprep.subr.mxu0 0.0
  %1175 = vmatpush1.msra.mxu0 0.0
  %1176 = vmatprep.subr.mxu0 0.0
  %1177 = vmatpush1.msra.mxu0 0.0
  %1178 = vmatprep.subr.mxu0 0.0
  %1179 = vmatpush1.msra.mxu0 0.0
  %1180 = vmatprep.subr.mxu0 0.0
  %1181 = vmatpush1.msra.mxu0 0.0
  %1182 = vmatprep.subr.mxu0 0.0
  %1183 = vmatpush1.msra.mxu0 0.0
  %1184 = vmatprep.subr.mxu0 0.0
  %1185 = vmatpush1.msra.mxu0 0.0
  %1186 = vmatprep.subr.mxu0 0.0
  %1187 = vmatpush1.msra.mxu0 0.0
  %1188 = vmatprep.subr.mxu0 0.0
  %1189 = vmatpush1.msra.mxu0 0.0
  %1190 = vmatprep.subr.mxu0 0.0
  %1191 = vmatpush1.msra.mxu0 0.0
  %1192 = vmatprep.mubr.f32.mxu0 0.0
  %1193 = vmatmul.mubr.f32.gmra.mrb[0].mxu0 %v492
  %v1194 = vpop.f32.mrb[0].mxu0
  %v1195 = vadd.f32 %v479, %v1194
  %v1196 = vpop.f32.mrb[0].mxu0
  %v1197 = vadd.f32 %v479, %v1196
  %1198 = vmatprep.mubr.f32.mxu0 0.0
  %1199 = vmatmul.mubr.f32.gmra.mrb[0].mxu0 %v494
  %v1200 = vpop.f32.mrb[0].mxu0
  %v1201 = vadd.f32 %v484, %v1200
  %v1202 = vpop.f32.mrb[0].mxu0
  %v1203 = vadd.f32 %v484, %v1202
  %1204 = vmatprep.mubr.f32.mxu0 0.0
  %1205 = vmatmul.mubr.f32.gmra.mrb[0].mxu0 %v496
  %v1206 = vpop.f32.mrb[0].mxu0
  %v1207 = vadd.f32 %v489, %v1206
  %v1208 = vpop.f32.mrb[0].mxu0
  %v1209 = vadd.f32 %v489, %v1208
  %1210 = vdwg.mxu0
  %v1211 = vtanh.pop %v614
  %v1212 = vtanh.pop %v616
  %v1213 = vtanh.pop %v697
  %v1214 = vtanh.pop %v699
  %v1215 = vtanh.pop %v780
  %v1216 = vtanh.pop %v782
  %v1217 = vtanh.pop %v863
  %v1218 = vtanh.pop %v865
  %v1219 = vtanh.pop %v946
  %v1220 = vtanh.pop %v948
  %v1221 = vtanh.pop %v1029
  %v1222 = vtanh.pop %v1031
  %v1223 = vtanh.pop %v1112
  %v1224 = vtanh.pop %v1114
  %v1225 = vtanh.pop %v1195
  %v1226 = vtanh.pop %v1197
  %v1227 = vtanh.pop %v620
  %v1228 = vtanh.pop %v622
  %v1229 = vtanh.pop %v703
  %v1230 = vtanh.pop %v705
  %v1231 = vtanh.pop %v786
  %v1232 = vtanh.pop %v788
  %v1233 = vtanh.pop %v869
  %v1234 = vtanh.pop %v871
  %v1235 = vtanh.pop %v952
  %v1236 = vtanh.pop %v954
  %v1237 = vtanh.pop %v1035
  %v1238 = vtanh.pop %v1037
  %v1239 = vtanh.pop %v1118
  %v1240 = vtanh.pop %v1120
  %v1241 = vtanh.pop %v1201
  %v1242 = vtanh.pop %v1203
  %v1243 = vtanh.pop %v626
  %v1244 = vtanh.pop %v628
  %v1245 = vtanh.pop %v709
  %v1246 = vtanh.pop %v711
  %v1247 = vtanh.pop %v792
  %v1248 = vtanh.pop %v794
  %v1249 = vtanh.pop %v875
  %v1250 = vtanh.pop %v877
  %v1251 = vtanh.pop %v958
  %v1252 = vtanh.pop %v960
  %v1253 = vtanh.pop %v1041
  %v1254 = vtanh.pop %v1043
  %v1255 = vtanh.pop %v1124
  %v1256 = vtanh.pop %v1126
  %v1257 = vtanh.pop %v1207
  %v1258 = vtanh.pop %v1209
  %v1259 = vld [vmem:[%s3] sm:$0xff]
  %v1260 = vld [vmem:[%s3 + $0x8] sm:$0xff]
  %v1261 = vld [vmem:[%s3 + $0x10] sm:$0xf]
  %1263 = vset.pattern.permute.xlu0 20
  %1264 = vperm.xlu0 %1263, %v1259
  %v1265 = vpop.permute.xlu0 %1264
  %1268 = vset.pattern.permute.xlu0 20
  %1269 = vperm.xlu0 %1268, %v1260
  %v1270 = vpop.permute.xlu0 %1269
  %1273 = vset.pattern.permute.xlu0 20
  %1274 = vperm.xlu0 %1273, %v1261
  %v1275 = vpop.permute.xlu0 %1274
  %v1277 = vsel %vm491, %v1259, 0
  %v1279 = vsel %vm491, %v1260, 0
  %v1281 = vsel %vm491, %v1261, 0
  %v1284 = vsel %vm498, %v1243, 0
  %v1287 = vsel %vm498, %v1244, 0
  %v1290 = vsel %vm498, %v1245, 0
  %v1293 = vsel %vm498, %v1246, 0
  %v1296 = vsel %vm498, %v1247, 0
  %v1299 = vsel %vm498, %v1248, 0
  %v1302 = vsel %vm498, %v1249, 0
  %v1305 = vsel %vm498, %v1250, 0
  %v1308 = vsel %vm498, %v1251, 0
  %v1311 = vsel %vm498, %v1252, 0
  %v1314 = vsel %vm498, %v1253, 0
  %v1317 = vsel %vm498, %v1254, 0
  %v1320 = vsel %vm498, %v1255, 0
  %v1323 = vsel %vm498, %v1256, 0
  %v1326 = vsel %vm498, %v1257, 0
  %v1329 = vsel %vm498, %v1258, 0
  %1331 = vmatprep.subr.mxu0 %v1212
  %1332 = vmatpush1.msra.mxu0 %v1211
  %1333 = vmatprep.subr.mxu0 %v1228
  %1334 = vmatpush1.msra.mxu0 %v1227
  %1335 = vmatprep.subr.mxu0 %v1287
  %1336 = vmatpush1.msra.mxu0 %v1284
  %1337 = vmatprep.subr.mxu0 0.0
  %1338 = vmatpush1.msra.mxu0 0.0
  %1339 = vmatprep.subr.mxu0 0.0
  %1340 = vmatpush1.msra.mxu0 0.0
  %1341 = vmatprep.subr.mxu0 0.0
  %1342 = vmatpush1.msra.mxu0 0.0
  %1343 = vmatprep.subr.mxu0 0.0
  %1344 = vmatpush1.msra.mxu0 0.0
  %1345 = vmatprep.subr.mxu0 0.0
  %1346 = vmatpush1.msra.mxu0 0.0
  %1347 = vmatprep.subr.mxu0 0.0
  %1348 = vmatpush1.msra.mxu0 0.0
  %1349 = vmatprep.subr.mxu0 0.0
  %1350 = vmatpush1.msra.mxu0 0.0
  %1351 = vmatprep.subr.mxu0 0.0
  %1352 = vmatpush1.msra.mxu0 0.0
  %1353 = vmatprep.subr.mxu0 0.0
  %1354 = vmatpush1.msra.mxu0 0.0
  %1355 = vmatprep.subr.mxu0 0.0
  %1356 = vmatpush1.msra.mxu0 0.0
  %1357 = vmatprep.subr.mxu0 0.0
  %1358 = vmatpush1.msra.mxu0 0.0
  %1359 = vmatprep.subr.mxu0 0.0
  %1360 = vmatpush1.msra.mxu0 0.0
  %1361 = vmatprep.subr.mxu0 0.0
  %1362 = vmatpush1.msra.mxu0 0.0
  %1363 = vmatprep.subr.mxu0 0.0
  %1364 = vmatpush1.msra.mxu0 0.0
  %1365 = vmatprep.subr.mxu0 0.0
  %1366 = vmatpush1.msra.mxu0 0.0
  %1367 = vmatprep.subr.mxu0 0.0
  %1368 = vmatpush1.msra.mxu0 0.0
  %1369 = vmatprep.subr.mxu0 0.0
  %1370 = vmatpush1.msra.mxu0 0.0
  %1371 = vmatprep.subr.mxu0 0.0
  %1372 = vmatpush1.msra.mxu0 0.0
  %1373 = vmatprep.subr.mxu0 0.0
  %1374 = vmatpush1.msra.mxu0 0.0
  %1375 = vmatprep.subr.mxu0 0.0
  %1376 = vmatpush1.msra.mxu0 0.0
  %1377 = vmatprep.subr.mxu0 0.0
  %1378 = vmatpush1.msra.mxu0 0.0
  %1379 = vmatprep.subr.mxu0 0.0
  %1380 = vmatpush1.msra.mxu0 0.0
  %1381 = vmatprep.subr.mxu0 0.0
  %1382 = vmatpush1.msra.mxu0 0.0
  %1383 = vmatprep.subr.mxu0 0.0
  %1384 = vmatpush1.msra.mxu0 0.0
  %1385 = vmatprep.subr.mxu0 0.0
  %1386 = vmatpush1.msra.mxu0 0.0
  %1387 = vmatprep.subr.mxu0 0.0
  %1388 = vmatpush1.msra.mxu0 0.0
  %1389 = vmatprep.subr.mxu0 0.0
  %1390 = vmatpush1.msra.mxu0 0.0
  %1391 = vmatprep.subr.mxu0 0.0
  %1392 = vmatpush1.msra.mxu0 0.0
  %1393 = vmatprep.subr.mxu0 0.0
  %1394 = vmatpush1.msra.mxu0 0.0
  %1395 = vmatprep.mubr.f32.mxu0 0.0
  %1396 = vmatmul.mubr.f32.gmra.mrb[0].mxu0 %v1277
  %v1397 = vpop.f32.mrb[0].mxu0
  %v1398 = vadd.f32 %v1265, %v1397
  %v1399 = vpop.f32.mrb[0].mxu0
  %v1400 = vadd.f32 %v1265, %v1399
  %1401 = vmatprep.mubr.f32.mxu0 0.0
  %1402 = vmatmul.mubr.f32.gmra.mrb[0].mxu0 %v1279
  %v1403 = vpop.f32.mrb[0].mxu0
  %v1404 = vadd.f32 %v1270, %v1403
  %v1405 = vpop.f32.mrb[0].mxu0
  %v1406 = vadd.f32 %v1270, %v1405
  %1407 = vmatprep.mubr.f32.mxu0 0.0
  %1408 = vmatmul.mubr.f32.gmra.mrb[0].mxu0 %v1281
  %v1409 = vpop.f32.mrb[0].mxu0
  %v1410 = vadd.f32 %v1275, %v1409
  %v1411 = vpop.f32.mrb[0].mxu0
  %v1412 = vadd.f32 %v1275, %v1411
  %1413 = vdwg.mxu0
  %1414 = vmatprep.subr.mxu0 %v1214
  %1415 = vmatpush1.msra.mxu0 %v1213
  %1416 = vmatprep.subr.mxu0 %v1230
  %1417 = vmatpush1.msra.mxu0 %v1229
  %1418 = vmatprep.subr.mxu0 %v1293
  %1419 = vmatpush1.msra.mxu0 %v1290
  %1420 = vmatprep.subr.mxu0 0.0
  %1421 = vmatpush1.msra.mxu0 0.0
  %1422 = vmatprep.subr.mxu0 0.0
  %1423 = vmatpush1.msra.mxu0 0.0
  %1424 = vmatprep.subr.mxu0 0.0
  %1425 = vmatpush1.msra.mxu0 0.0
  %1426 = vmatprep.subr.mxu0 0.0
  %1427 = vmatpush1.msra.mxu0 0.0
  %1428 = vmatprep.subr.mxu0 0.0
  %1429 = vmatpush1.msra.mxu0 0.0
  %1430 = vmatprep.subr.mxu0 0.0
  %1431 = vmatpush1.msra.mxu0 0.0
  %1432 = vmatprep.subr.mxu0 0.0
  %1433 = vmatpush1.msra.mxu0 0.0
  %1434 = vmatprep.subr.mxu0 0.0
  %1435 = vmatpush1.msra.mxu0 0.0
  %1436 = vmatprep.subr.mxu0 0.0
  %1437 = vmatpush1.msra.mxu0 0.0
  %1438 = vmatprep.subr.mxu0 0.0
  %1439 = vmatpush1.msra.mxu0 0.0
  %1440 = vmatprep.subr.mxu0 0.0
  %1441 = vmatpush1.msra.mxu0 0.0
  %1442 = vmatprep.subr.mxu0 0.0
  %1443 = vmatpush1.msra.mxu0 0.0
  %1444 = vmatprep.subr.mxu0 0.0
  %1445 = vmatpush1.msra.mxu0 0.0
  %1446 = vmatprep.subr.mxu0 0.0
  %1447 = vmatpush1.msra.mxu0 0.0
  %1448 = vmatprep.subr.mxu0 0.0
  %1449 = vmatpush1.msra.mxu0 0.0
  %1450 = vmatprep.subr.mxu0 0.0
  %1451 = vmatpush1.msra.mxu0 0.0
  %1452 = vmatprep.subr.mxu0 0.0
  %1453 = vmatpush1.msra.mxu0 0.0
  %1454 = vmatprep.subr.mxu0 0.0
  %1455 = vmatpush1.msra.mxu0 0.0
  %1456 = vmatprep.subr.mxu0 0.0
  %1457 = vmatpush1.msra.mxu0 0.0
  %1458 = vmatprep.subr.mxu0 0.0
  %1459 = vmatpush1.msra.mxu0 0.0
  %1460 = vmatprep.subr.mxu0 0.0
  %1461 = vmatpush1.msra.mxu0 0.0
  %1462 = vmatprep.subr.mxu0 0.0
  %1463 = vmatpush1.msra.mxu0 0.0
  %1464 = vmatprep.subr.mxu0 0.0
  %1465 = vmatpush1.msra.mxu0 0.0
  %1466 = vmatprep.subr.mxu0 0.0
  %1467 = vmatpush1.msra.mxu0 0.0
  %1468 = vmatprep.subr.mxu0 0.0
  %1469 = vmatpush1.msra.mxu0 0.0
  %1470 = vmatprep.subr.mxu0 0.0
  %1471 = vmatpush1.msra.mxu0 0.0
  %1472 = vmatprep.subr.mxu0 0.0
  %1473 = vmatpush1.msra.mxu0 0.0
  %1474 = vmatprep.subr.mxu0 0.0
  %1475 = vmatpush1.msra.mxu0 0.0
  %1476 = vmatprep.subr.mxu0 0.0
  %1477 = vmatpush1.msra.mxu0 0.0
  %1478 = vmatprep.mubr.f32.mxu0 0.0
  %1479 = vmatmul.mubr.f32.gmra.mrb[0].mxu0 %v1277
  %v1480 = vpop.f32.mrb[0].mxu0
  %v1481 = vadd.f32 %v1265, %v1480
  %v1482 = vpop.f32.mrb[0].mxu0
  %v1483 = vadd.f32 %v1265, %v1482
  %1484 = vmatprep.mubr.f32.mxu0 0.0
  %1485 = vmatmul.mubr.f32.gmra.mrb[0].mxu0 %v1279
  %v1486 = vpop.f32.mrb[0].mxu0
  %v1487 = vadd.f32 %v1270, %v1486
  %v1488 = vpop.f32.mrb[0].mxu0
  %v1489 = vadd.f32 %v1270, %v1488
  %1490 = vmatprep.mubr.f32.mxu0 0.0
  %1491 = vmatmul.mubr.f32.gmra.mrb[0].mxu0 %v1281
  %v1492 = vpop.f32.mrb[0].mxu0
  %v1493 = vadd.f32 %v1275, %v1492
  %v1494 = vpop.f32.mrb[0].mxu0
  %v1495 = vadd.f32 %v1275, %v1494
  %1496 = vdwg.mxu0
  %1497 = vmatprep.subr.mxu0 %v1216
  %1498 = vmatpush1.msra.mxu0 %v1215
  %1499 = vmatprep.subr.mxu0 %v1232
  %1500 = vmatpush1.msra.mxu0 %v1231
  %1501 = vmatprep.subr.mxu0 %v1299
  %1502 = vmatpush1.msra.mxu0 %v1296
  %1503 = vmatprep.subr.mxu0 0.0
  %1504 = vmatpush1.msra.mxu0 0.0
  %1505 = vmatprep.subr.mxu0 0.0
  %1506 = vmatpush1.msra.mxu0 0.0
  %1507 = vmatprep.subr.mxu0 0.0
  %1508 = vmatpush1.msra.mxu0 0.0
  %1509 = vmatprep.subr.mxu0 0.0
  %1510 = vmatpush1.msra.mxu0 0.0
  %1511 = vmatprep.subr.mxu0 0.0
  %1512 = vmatpush1.msra.mxu0 0.0
  %1513 = vmatprep.subr.mxu0 0.0
  %1514 = vmatpush1.msra.mxu0 0.0
  %1515 = vmatprep.subr.mxu0 0.0
  %1516 = vmatpush1.msra.mxu0 0.0
  %1517 = vmatprep.subr.mxu0 0.0
  %1518 = vmatpush1.msra.mxu0 0.0
  %1519 = vmatprep.subr.mxu0 0.0
  %1520 = vmatpush1.msra.mxu0 0.0
  %1521 = vmatprep.subr.mxu0 0.0
  %1522 = vmatpush1.msra.mxu0 0.0
  %1523 = vmatprep.subr.mxu0 0.0
  %1524 = vmatpush1.msra.mxu0 0.0
  %1525 = vmatprep.subr.mxu0 0.0
  %1526 = vmatpush1.msra.mxu0 0.0
  %1527 = vmatprep.subr.mxu0 0.0
  %1528 = vmatpush1.msra.mxu0 0.0
  %1529 = vmatprep.subr.mxu0 0.0
  %1530 = vmatpush1.msra.mxu0 0.0
  %1531 = vmatprep.subr.mxu0 0.0
  %1532 = vmatpush1.msra.mxu0 0.0
  %1533 = vmatprep.subr.mxu0 0.0
  %1534 = vmatpush1.msra.mxu0 0.0
  %1535 = vmatprep.subr.mxu0 0.0
  %1536 = vmatpush1.msra.mxu0 0.0
  %1537 = vmatprep.subr.mxu0 0.0
  %1538 = vmatpush1.msra.mxu0 0.0
  %1539 = vmatprep.subr.mxu0 0.0
  %1540 = vmatpush1.msra.mxu0 0.0
  %1541 = vmatprep.subr.mxu0 0.0
  %1542 = vmatpush1.msra.mxu0 0.0
  %1543 = vmatprep.subr.mxu0 0.0
  %1544 = vmatpush1.msra.mxu0 0.0
  %1545 = vmatprep.subr.mxu0 0.0
  %1546 = vmatpush1.msra.mxu0 0.0
  %1547 = vmatprep.subr.mxu0 0.0
  %1548 = vmatpush1.msra.mxu0 0.0
  %1549 = vmatprep.subr.mxu0 0.0
  %1550 = vmatpush1.msra.mxu0 0.0
  %1551 = vmatprep.subr.mxu0 0.0
  %1552 = vmatpush1.msra.mxu0 0.0
  %1553 = vmatprep.subr.mxu0 0.0
  %1554 = vmatpush1.msra.mxu0 0.0
  %1555 = vmatprep.subr.mxu0 0.0
  %1556 = vmatpush1.msra.mxu0 0.0
  %1557 = vmatprep.subr.mxu0 0.0
  %1558 = vmatpush1.msra.mxu0 0.0
  %1559 = vmatprep.subr.mxu0 0.0
  %1560 = vmatpush1.msra.mxu0 0.0
  %1561 = vmatprep.mubr.f32.mxu0 0.0
  %1562 = vmatmul.mubr.f32.gmra.mrb[0].mxu0 %v1277
  %v1563 = vpop.f32.mrb[0].mxu0
  %v1564 = vadd.f32 %v1265, %v1563
  %v1565 = vpop.f32.mrb[0].mxu0
  %v1566 = vadd.f32 %v1265, %v1565
  %1567 = vmatprep.mubr.f32.mxu0 0.0
  %1568 = vmatmul.mubr.f32.gmra.mrb[0].mxu0 %v1279
  %v1569 = vpop.f32.mrb[0].mxu0
  %v1570 = vadd.f32 %v1270, %v1569
  %v1571 = vpop.f32.mrb[0].mxu0
  %v1572 = vadd.f32 %v1270, %v1571
  %1573 = vmatprep.mubr.f32.mxu0 0.0
  %1574 = vmatmul.mubr.f32.gmra.mrb[0].mxu0 %v1281
  %v1575 = vpop.f32.mrb[0].mxu0
  %v1576 = vadd.f32 %v1275, %v1575
  %v1577 = vpop.f32.mrb[0].mxu0
  %v1578 = vadd.f32 %v1275, %v1577
  %1579 = vdwg.mxu0
  %1580 = vmatprep.subr.mxu0 %v1218
  %1581 = vmatpush1.msra.mxu0 %v1217
  %1582 = vmatprep.subr.mxu0 %v1234
  %1583 = vmatpush1.msra.mxu0 %v1233
  %1584 = vmatprep.subr.mxu0 %v1305
  %1585 = vmatpush1.msra.mxu0 %v1302
  %1586 = vmatprep.subr.mxu0 0.0
  %1587 = vmatpush1.msra.mxu0 0.0
  %1588 = vmatprep.subr.mxu0 0.0
  %1589 = vmatpush1.msra.mxu0 0.0
  %1590 = vmatprep.subr.mxu0 0.0
  %1591 = vmatpush1.msra.mxu0 0.0
  %1592 = vmatprep.subr.mxu0 0.0
  %1593 = vmatpush1.msra.mxu0 0.0
  %1594 = vmatprep.subr.mxu0 0.0
  %1595 = vmatpush1.msra.mxu0 0.0
  %1596 = vmatprep.subr.mxu0 0.0
  %1597 = vmatpush1.msra.mxu0 0.0
  %1598 = vmatprep.subr.mxu0 0.0
  %1599 = vmatpush1.msra.mxu0 0.0
  %1600 = vmatprep.subr.mxu0 0.0
  %1601 = vmatpush1.msra.mxu0 0.0
  %1602 = vmatprep.subr.mxu0 0.0
  %1603 = vmatpush1.msra.mxu0 0.0
  %1604 = vmatprep.subr.mxu0 0.0
  %1605 = vmatpush1.msra.mxu0 0.0
  %1606 = vmatprep.subr.mxu0 0.0
  %1607 = vmatpush1.msra.mxu0 0.0
  %1608 = vmatprep.subr.mxu0 0.0
  %1609 = vmatpush1.msra.mxu0 0.0
  %1610 = vmatprep.subr.mxu0 0.0
  %1611 = vmatpush1.msra.mxu0 0.0
  %1612 = vmatprep.subr.mxu0 0.0
  %1613 = vmatpush1.msra.mxu0 0.0
  %1614 = vmatprep.subr.mxu0 0.0
  %1615 = vmatpush1.msra.mxu0 0.0
  %1616 = vmatprep.subr.mxu0 0.0
  %1617 = vmatpush1.msra.mxu0 0.0
  %1618 = vmatprep.subr.mxu0 0.0
  %1619 = vmatpush1.msra.mxu0 0.0
  %1620 = vmatprep.subr.mxu0 0.0
  %1621 = vmatpush1.msra.mxu0 0.0
  %1622 = vmatprep.subr.mxu0 0.0
  %1623 = vmatpush1.msra.mxu0 0.0
  %1624 = vmatprep.subr.mxu0 0.0
  %1625 = vmatpush1.msra.mxu0 0.0
  %1626 = vmatprep.subr.mxu0 0.0
  %1627 = vmatpush1.msra.mxu0 0.0
  %1628 = vmatprep.subr.mxu0 0.0
  %1629 = vmatpush1.msra.mxu0 0.0
  %1630 = vmatprep.subr.mxu0 0.0
  %1631 = vmatpush1.msra.mxu0 0.0
  %1632 = vmatprep.subr.mxu0 0.0
  %1633 = vmatpush1.msra.mxu0 0.0
  %1634 = vmatprep.subr.mxu0 0.0
  %1635 = vmatpush1.msra.mxu0 0.0
  %1636 = vmatprep.subr.mxu0 0.0
  %1637 = vmatpush1.msra.mxu0 0.0
  %1638 = vmatprep.subr.mxu0 0.0
  %1639 = vmatpush1.msra.mxu0 0.0
  %1640 = vmatprep.subr.mxu0 0.0
  %1641 = vmatpush1.msra.mxu0 0.0
  %1642 = vmatprep.subr.mxu0 0.0
  %1643 = vmatpush1.msra.mxu0 0.0
  %1644 = vmatprep.mubr.f32.mxu0 0.0
  %1645 = vmatmul.mubr.f32.gmra.mrb[0].mxu0 %v1277
  %v1646 = vpop.f32.mrb[0].mxu0
  %v1647 = vadd.f32 %v1265, %v1646
  %v1648 = vpop.f32.mrb[0].mxu0
  %v1649 = vadd.f32 %v1265, %v1648
  %1650 = vmatprep.mubr.f32.mxu0 0.0
  %1651 = vmatmul.mubr.f32.gmra.mrb[0].mxu0 %v1279
  %v1652 = vpop.f32.mrb[0].mxu0
  %v1653 = vadd.f32 %v1270, %v1652
  %v1654 = vpop.f32.mrb[0].mxu0
  %v1655 = vadd.f32 %v1270, %v1654
  %1656 = vmatprep.mubr.f32.mxu0 0.0
  %1657 = vmatmul.mubr.f32.gmra.mrb[0].mxu0 %v1281
  %v1658 = vpop.f32.mrb[0].mxu0
  %v1659 = vadd.f32 %v1275, %v1658
  %v1660 = vpop.f32.mrb[0].mxu0
  %v1661 = vadd.f32 %v1275, %v1660
  %1662 = vdwg.mxu0
  %1663 = vmatprep.subr.mxu0 %v1220
  %1664 = vmatpush1.msra.mxu0 %v1219
  %1665 = vmatprep.subr.mxu0 %v1236
  %1666 = vmatpush1.msra.mxu0 %v1235
  %1667 = vmatprep.subr.mxu0 %v1311
  %1668 = vmatpush1.msra.mxu0 %v1308
  %1669 = vmatprep.subr.mxu0 0.0
  %1670 = vmatpush1.msra.mxu0 0.0
  %1671 = vmatprep.subr.mxu0 0.0
  %1672 = vmatpush1.msra.mxu0 0.0
  %1673 = vmatprep.subr.mxu0 0.0
  %1674 = vmatpush1.msra.mxu0 0.0
  %1675 = vmatprep.subr.mxu0 0.0
  %1676 = vmatpush1.msra.mxu0 0.0
  %1677 = vmatprep.subr.mxu0 0.0
  %1678 = vmatpush1.msra.mxu0 0.0
  %1679 = vmatprep.subr.mxu0 0.0
  %1680 = vmatpush1.msra.mxu0 0.0
  %1681 = vmatprep.subr.mxu0 0.0
  %1682 = vmatpush1.msra.mxu0 0.0
  %1683 = vmatprep.subr.mxu0 0.0
  %1684 = vmatpush1.msra.mxu0 0.0
  %1685 = vmatprep.subr.mxu0 0.0
  %1686 = vmatpush1.msra.mxu0 0.0
  %1687 = vmatprep.subr.mxu0 0.0
  %1688 = vmatpush1.msra.mxu0 0.0
  %1689 = vmatprep.subr.mxu0 0.0
  %1690 = vmatpush1.msra.mxu0 0.0
  %1691 = vmatprep.subr.mxu0 0.0
  %1692 = vmatpush1.msra.mxu0 0.0
  %1693 = vmatprep.subr.mxu0 0.0
  %1694 = vmatpush1.msra.mxu0 0.0
  %1695 = vmatprep.subr.mxu0 0.0
  %1696 = vmatpush1.msra.mxu0 0.0
  %1697 = vmatprep.subr.mxu0 0.0
  %1698 = vmatpush1.msra.mxu0 0.0
  %1699 = vmatprep.subr.mxu0 0.0
  %1700 = vmatpush1.msra.mxu0 0.0
  %1701 = vmatprep.subr.mxu0 0.0
  %1702 = vmatpush1.msra.mxu0 0.0
  %1703 = vmatprep.subr.mxu0 0.0
  %1704 = vmatpush1.msra.mxu0 0.0
  %1705 = vmatprep.subr.mxu0 0.0
  %1706 = vmatpush1.msra.mxu0 0.0
  %1707 = vmatprep.subr.mxu0 0.0
  %1708 = vmatpush1.msra.mxu0 0.0
  %1709 = vmatprep.subr.mxu0 0.0
  %1710 = vmatpush1.msra.mxu0 0.0
  %1711 = vmatprep.subr.mxu0 0.0
  %1712 = vmatpush1.msra.mxu0 0.0
  %1713 = vmatprep.subr.mxu0 0.0
  %1714 = vmatpush1.msra.mxu0 0.0
  %1715 = vmatprep.subr.mxu0 0.0
  %1716 = vmatpush1.msra.mxu0 0.0
  %1717 = vmatprep.subr.mxu0 0.0
  %1718 = vmatpush1.msra.mxu0 0.0
  %1719 = vmatprep.subr.mxu0 0.0
  %1720 = vmatpush1.msra.mxu0 0.0
  %1721 = vmatprep.subr.mxu0 0.0
  %1722 = vmatpush1.msra.mxu0 0.0
  %1723 = vmatprep.subr.mxu0 0.0
  %1724 = vmatpush1.msra.mxu0 0.0
  %1725 = vmatprep.subr.mxu0 0.0
  %1726 = vmatpush1.msra.mxu0 0.0
  %1727 = vmatprep.mubr.f32.mxu0 0.0
  %1728 = vmatmul.mubr.f32.gmra.mrb[0].mxu0 %v1277
  %v1729 = vpop.f32.mrb[0].mxu0
  %v1730 = vadd.f32 %v1265, %v1729
  %v1731 = vpop.f32.mrb[0].mxu0
  %v1732 = vadd.f32 %v1265, %v1731
  %1733 = vmatprep.mubr.f32.mxu0 0.0
  %1734 = vmatmul.mubr.f32.gmra.mrb[0].mxu0 %v1279
  %v1735 = vpop.f32.mrb[0].mxu0
  %v1736 = vadd.f32 %v1270, %v1735
  %v1737 = vpop.f32.mrb[0].mxu0
  %v1738 = vadd.f32 %v1270, %v1737
  %1739 = vmatprep.mubr.f32.mxu0 0.0
  %1740 = vmatmul.mubr.f32.gmra.mrb[0].mxu0 %v1281
  %v1741 = vpop.f32.mrb[0].mxu0
  %v1742 = vadd.f32 %v1275, %v1741
  %v1743 = vpop.f32.mrb[0].mxu0
  %v1744 = vadd.f32 %v1275, %v1743
  %1745 = vdwg.mxu0
  %1746 = vmatprep.subr.mxu0 %v1222
  %1747 = vmatpush1.msra.mxu0 %v1221
  %1748 = vmatprep.subr.mxu0 %v1238
  %1749 = vmatpush1.msra.mxu0 %v1237
  %1750 = vmatprep.subr.mxu0 %v1317
  %1751 = vmatpush1.msra.mxu0 %v1314
  %1752 = vmatprep.subr.mxu0 0.0
  %1753 = vmatpush1.msra.mxu0 0.0
  %1754 = vmatprep.subr.mxu0 0.0
  %1755 = vmatpush1.msra.mxu0 0.0
  %1756 = vmatprep.subr.mxu0 0.0
  %1757 = vmatpush1.msra.mxu0 0.0
  %1758 = vmatprep.subr.mxu0 0.0
  %1759 = vmatpush1.msra.mxu0 0.0
  %1760 = vmatprep.subr.mxu0 0.0
  %1761 = vmatpush1.msra.mxu0 0.0
  %1762 = vmatprep.subr.mxu0 0.0
  %1763 = vmatpush1.msra.mxu0 0.0
  %1764 = vmatprep.subr.mxu0 0.0
  %1765 = vmatpush1.msra.mxu0 0.0
  %1766 = vmatprep.subr.mxu0 0.0
  %1767 = vmatpush1.msra.mxu0 0.0
  %1768 = vmatprep.subr.mxu0 0.0
  %1769 = vmatpush1.msra.mxu0 0.0
  %1770 = vmatprep.subr.mxu0 0.0
  %1771 = vmatpush1.msra.mxu0 0.0
  %1772 = vmatprep.subr.mxu0 0.0
  %1773 = vmatpush1.msra.mxu0 0.0
  %1774 = vmatprep.subr.mxu0 0.0
  %1775 = vmatpush1.msra.mxu0 0.0
  %1776 = vmatprep.subr.mxu0 0.0
  %1777 = vmatpush1.msra.mxu0 0.0
  %1778 = vmatprep.subr.mxu0 0.0
  %1779 = vmatpush1.msra.mxu0 0.0
  %1780 = vmatprep.subr.mxu0 0.0
  %1781 = vmatpush1.msra.mxu0 0.0
  %1782 = vmatprep.subr.mxu0 0.0
  %1783 = vmatpush1.msra.mxu0 0.0
  %1784 = vmatprep.subr.mxu0 0.0
  %1785 = vmatpush1.msra.mxu0 0.0
  %1786 = vmatprep.subr.mxu0 0.0
  %1787 = vmatpush1.msra.mxu0 0.0
  %1788 = vmatprep.subr.mxu0 0.0
  %1789 = vmatpush1.msra.mxu0 0.0
  %1790 = vmatprep.subr.mxu0 0.0
  %1791 = vmatpush1.msra.mxu0 0.0
  %1792 = vmatprep.subr.mxu0 0.0
  %1793 = vmatpush1.msra.mxu0 0.0
  %1794 = vmatprep.subr.mxu0 0.0
  %1795 = vmatpush1.msra.mxu0 0.0
  %1796 = vmatprep.subr.mxu0 0.0
  %1797 = vmatpush1.msra.mxu0 0.0
  %1798 = vmatprep.subr.mxu0 0.0
  %1799 = vmatpush1.msra.mxu0 0.0
  %1800 = vmatprep.subr.mxu0 0.0
  %1801 = vmatpush1.msra.mxu0 0.0
  %1802 = vmatprep.subr.mxu0 0.0
  %1803 = vmatpush1.msra.mxu0 0.0
  %1804 = vmatprep.subr.mxu0 0.0
  %1805 = vmatpush1.msra.mxu0 0.0
  %1806 = vmatprep.subr.mxu0 0.0
  %1807 = vmatpush1.msra.mxu0 0.0
  %1808 = vmatprep.subr.mxu0 0.0
  %1809 = vmatpush1.msra.mxu0 0.0
  %1810 = vmatprep.mubr.f32.mxu0 0.0
  %1811 = vmatmul.mubr.f32.gmra.mrb[0].mxu0 %v1277
  %v1812 = vpop.f32.mrb[0].mxu0
  %v1813 = vadd.f32 %v1265, %v1812
  %v1814 = vpop.f32.mrb[0].mxu0
  %v1815 = vadd.f32 %v1265, %v1814
  %1816 = vmatprep.mubr.f32.mxu0 0.0
  %1817 = vmatmul.mubr.f32.gmra.mrb[0].mxu0 %v1279
  %v1818 = vpop.f32.mrb[0].mxu0
  %v1819 = vadd.f32 %v1270, %v1818
  %v1820 = vpop.f32.mrb[0].mxu0
  %v1821 = vadd.f32 %v1270, %v1820
  %1822 = vmatprep.mubr.f32.mxu0 0.0
  %1823 = vmatmul.mubr.f32.gmra.mrb[0].mxu0 %v1281
  %v1824 = vpop.f32.mrb[0].mxu0
  %v1825 = vadd.f32 %v1275, %v1824
  %v1826 = vpop.f32.mrb[0].mxu0
  %v1827 = vadd.f32 %v1275, %v1826
  %1828 = vdwg.mxu0
  %1829 = vmatprep.subr.mxu0 %v1224
  %1830 = vmatpush1.msra.mxu0 %v1223
  %1831 = vmatprep.subr.mxu0 %v1240
  %1832 = vmatpush1.msra.mxu0 %v1239
  %1833 = vmatprep.subr.mxu0 %v1323
  %1834 = vmatpush1.msra.mxu0 %v1320
  %1835 = vmatprep.subr.mxu0 0.0
  %1836 = vmatpush1.msra.mxu0 0.0
  %1837 = vmatprep.subr.mxu0 0.0
  %1838 = vmatpush1.msra.mxu0 0.0
  %1839 = vmatprep.subr.mxu0 0.0
  %1840 = vmatpush1.msra.mxu0 0.0
  %1841 = vmatprep.subr.mxu0 0.0
  %1842 = vmatpush1.msra.mxu0 0.0
  %1843 = vmatprep.subr.mxu0 0.0
  %1844 = vmatpush1.msra.mxu0 0.0
  %1845 = vmatprep.subr.mxu0 0.0
  %1846 = vmatpush1.msra.mxu0 0.0
  %1847 = vmatprep.subr.mxu0 0.0
  %1848 = vmatpush1.msra.mxu0 0.0
  %1849 = vmatprep.subr.mxu0 0.0
  %1850 = vmatpush1.msra.mxu0 0.0
  %1851 = vmatprep.subr.mxu0 0.0
  %1852 = vmatpush1.msra.mxu0 0.0
  %1853 = vmatprep.subr.mxu0 0.0
  %1854 = vmatpush1.msra.mxu0 0.0
  %1855 = vmatprep.subr.mxu0 0.0
  %1856 = vmatpush1.msra.mxu0 0.0
  %1857 = vmatprep.subr.mxu0 0.0
  %1858 = vmatpush1.msra.mxu0 0.0
  %1859 = vmatprep.subr.mxu0 0.0
  %1860 = vmatpush1.msra.mxu0 0.0
  %1861 = vmatprep.subr.mxu0 0.0
  %1862 = vmatpush1.msra.mxu0 0.0
  %1863 = vmatprep.subr.mxu0 0.0
  %1864 = vmatpush1.msra.mxu0 0.0
  %1865 = vmatprep.subr.mxu0 0.0
  %1866 = vmatpush1.msra.mxu0 0.0
  %1867 = vmatprep.subr.mxu0 0.0
  %1868 = vmatpush1.msra.mxu0 0.0
  %1869 = vmatprep.subr.mxu0 0.0
  %1870 = vmatpush1.msra.mxu0 0.0
  %1871 = vmatprep.subr.mxu0 0.0
  %1872 = vmatpush1.msra.mxu0 0.0
  %1873 = vmatprep.subr.mxu0 0.0
  %1874 = vmatpush1.msra.mxu0 0.0
  %1875 = vmatprep.subr.mxu0 0.0
  %1876 = vmatpush1.msra.mxu0 0.0
  %1877 = vmatprep.subr.mxu0 0.0
  %1878 = vmatpush1.msra.mxu0 0.0
  %1879 = vmatprep.subr.mxu0 0.0
  %1880 = vmatpush1.msra.mxu0 0.0
  %1881 = vmatprep.subr.mxu0 0.0
  %1882 = vmatpush1.msra.mxu0 0.0
  %1883 = vmatprep.subr.mxu0 0.0
  %1884 = vmatpush1.msra.mxu0 0.0
  %1885 = vmatprep.subr.mxu0 0.0
  %1886 = vmatpush1.msra.mxu0 0.0
  %1887 = vmatprep.subr.mxu0 0.0
  %1888 = vmatpush1.msra.mxu0 0.0
  %1889 = vmatprep.subr.mxu0 0.0
  %1890 = vmatpush1.msra.mxu0 0.0
  %1891 = vmatprep.subr.mxu0 0.0
  %1892 = vmatpush1.msra.mxu0 0.0
  %1893 = vmatprep.mubr.f32.mxu0 0.0
  %1894 = vmatmul.mubr.f32.gmra.mrb[0].mxu0 %v1277
  %v1895 = vpop.f32.mrb[0].mxu0
  %v1896 = vadd.f32 %v1265, %v1895
  %v1897 = vpop.f32.mrb[0].mxu0
  %v1898 = vadd.f32 %v1265, %v1897
  %1899 = vmatprep.mubr.f32.mxu0 0.0
  %1900 = vmatmul.mubr.f32.gmra.mrb[0].mxu0 %v1279
  %v1901 = vpop.f32.mrb[0].mxu0
  %v1902 = vadd.f32 %v1270, %v1901
  %v1903 = vpop.f32.mrb[0].mxu0
  %v1904 = vadd.f32 %v1270, %v1903
  %1905 = vmatprep.mubr.f32.mxu0 0.0
  %1906 = vmatmul.mubr.f32.gmra.mrb[0].mxu0 %v1281
  %v1907 = vpop.f32.mrb[0].mxu0
  %v1908 = vadd.f32 %v1275, %v1907
  %v1909 = vpop.f32.mrb[0].mxu0
  %v1910 = vadd.f32 %v1275, %v1909
  %1911 = vdwg.mxu0
  %1912 = vmatprep.subr.mxu0 %v1226
  %1913 = vmatpush1.msra.mxu0 %v1225
  %1914 = vmatprep.subr.mxu0 %v1242
  %1915 = vmatpush1.msra.mxu0 %v1241
  %1916 = vmatprep.subr.mxu0 %v1329
  %1917 = vmatpush1.msra.mxu0 %v1326
  %1918 = vmatprep.subr.mxu0 0.0
  %1919 = vmatpush1.msra.mxu0 0.0
  %1920 = vmatprep.subr.mxu0 0.0
  %1921 = vmatpush1.msra.mxu0 0.0
  %1922 = vmatprep.subr.mxu0 0.0
  %1923 = vmatpush1.msra.mxu0 0.0
  %1924 = vmatprep.subr.mxu0 0.0
  %1925 = vmatpush1.msra.mxu0 0.0
  %1926 = vmatprep.subr.mxu0 0.0
  %1927 = vmatpush1.msra.mxu0 0.0
  %1928 = vmatprep.subr.mxu0 0.0
  %1929 = vmatpush1.msra.mxu0 0.0
  %1930 = vmatprep.subr.mxu0 0.0
  %1931 = vmatpush1.msra.mxu0 0.0
  %1932 = vmatprep.subr.mxu0 0.0
  %1933 = vmatpush1.msra.mxu0 0.0
  %1934 = vmatprep.subr.mxu0 0.0
  %1935 = vmatpush1.msra.mxu0 0.0
  %1936 = vmatprep.subr.mxu0 0.0
  %1937 = vmatpush1.msra.mxu0 0.0
  %1938 = vmatprep.subr.mxu0 0.0
  %1939 = vmatpush1.msra.mxu0 0.0
  %1940 = vmatprep.subr.mxu0 0.0
  %1941 = vmatpush1.msra.mxu0 0.0
  %1942 = vmatprep.subr.mxu0 0.0
  %1943 = vmatpush1.msra.mxu0 0.0
  %1944 = vmatprep.subr.mxu0 0.0
  %1945 = vmatpush1.msra.mxu0 0.0
  %1946 = vmatprep.subr.mxu0 0.0
  %1947 = vmatpush1.msra.mxu0 0.0
  %1948 = vmatprep.subr.mxu0 0.0
  %1949 = vmatpush1.msra.mxu0 0.0
  %1950 = vmatprep.subr.mxu0 0.0
  %1951 = vmatpush1.msra.mxu0 0.0
  %1952 = vmatprep.subr.mxu0 0.0
  %1953 = vmatpush1.msra.mxu0 0.0
  %1954 = vmatprep.subr.mxu0 0.0
  %1955 = vmatpush1.msra.mxu0 0.0
  %1956 = vmatprep.subr.mxu0 0.0
  %1957 = vmatpush1.msra.mxu0 0.0
  %1958 = vmatprep.subr.mxu0 0.0
  %1959 = vmatpush1.msra.mxu0 0.0
  %1960 = vmatprep.subr.mxu0 0.0
  %1961 = vmatpush1.msra.mxu0 0.0
  %1962 = vmatprep.subr.mxu0 0.0
  %1963 = vmatpush1.msra.mxu0 0.0
  %1964 = vmatprep.subr.mxu0 0.0
  %1965 = vmatpush1.msra.mxu0 0.0
  %1966 = vmatprep.subr.mxu0 0.0
  %1967 = vmatpush1.msra.mxu0 0.0
  %1968 = vmatprep.subr.mxu0 0.0
  %1969 = vmatpush1.msra.mxu0 0.0
  %1970 = vmatprep.subr.mxu0 0.0
  %1971 = vmatpush1.msra.mxu0 0.0
  %1972 = vmatprep.subr.mxu0 0.0
  %1973 = vmatpush1.msra.mxu0 0.0
  %1974 = vmatprep.subr.mxu0 0.0
  %1975 = vmatpush1.msra.mxu0 0.0
  %1976 = vmatprep.mubr.f32.mxu0 0.0
  %1977 = vmatmul.mubr.f32.gmra.mrb[0].mxu0 %v1277
  %v1978 = vpop.f32.mrb[0].mxu0
  %v1979 = vadd.f32 %v1265, %v1978
  %v1980 = vpop.f32.mrb[0].mxu0
  %v1981 = vadd.f32 %v1265, %v1980
  %1982 = vmatprep.mubr.f32.mxu0 0.0
  %1983 = vmatmul.mubr.f32.gmra.mrb[0].mxu0 %v1279
  %v1984 = vpop.f32.mrb[0].mxu0
  %v1985 = vadd.f32 %v1270, %v1984
  %v1986 = vpop.f32.mrb[0].mxu0
  %v1987 = vadd.f32 %v1270, %v1986
  %1988 = vmatprep.mubr.f32.mxu0 0.0
  %1989 = vmatmul.mubr.f32.gmra.mrb[0].mxu0 %v1281
  %v1990 = vpop.f32.mrb[0].mxu0
  %v1991 = vadd.f32 %v1275, %v1990
  %v1992 = vpop.f32.mrb[0].mxu0
  %v1993 = vadd.f32 %v1275, %v1992
  %1994 = vdwg.mxu0
  %v1995 = vtanh.pop %v1398
  %v1996 = vtanh.pop %v1400
  %v1997 = vtanh.pop %v1481
  %v1998 = vtanh.pop %v1483
  %v1999 = vtanh.pop %v1564
  %v2000 = vtanh.pop %v1566
  %v2001 = vtanh.pop %v1647
  %v2002 = vtanh.pop %v1649
  %v2003 = vtanh.pop %v1730
  %v2004 = vtanh.pop %v1732
  %v2005 = vtanh.pop %v1813
  %v2006 = vtanh.pop %v1815
  %v2007 = vtanh.pop %v1896
  %v2008 = vtanh.pop %v1898
  %v2009 = vtanh.pop %v1979
  %v2010 = vtanh.pop %v1981
  %v2011 = vtanh.pop %v1404
  %v2012 = vtanh.pop %v1406
  %v2013 = vtanh.pop %v1487
  %v2014 = vtanh.pop %v1489
  %v2015 = vtanh.pop %v1570
  %v2016 = vtanh.pop %v1572
  %v2017 = vtanh.pop %v1653
  %v2018 = vtanh.pop %v1655
  %v2019 = vtanh.pop %v1736
  %v2020 = vtanh.pop %v1738
  %v2021 = vtanh.pop %v1819
  %v2022 = vtanh.pop %v1821
  %v2023 = vtanh.pop %v1902
  %v2024 = vtanh.pop %v1904
  %v2025 = vtanh.pop %v1985
  %v2026 = vtanh.pop %v1987
  %v2027 = vtanh.pop %v1410
  %v2028 = vtanh.pop %v1412
  %v2029 = vtanh.pop %v1493
  %v2030 = vtanh.pop %v1495
  %v2031 = vtanh.pop %v1576
  %v2032 = vtanh.pop %v1578
  %v2033 = vtanh.pop %v1659
  %v2034 = vtanh.pop %v1661
  %v2035 = vtanh.pop %v1742
  %v2036 = vtanh.pop %v1744
  %v2037 = vtanh.pop %v1825
  %v2038 = vtanh.pop %v1827
  %v2039 = vtanh.pop %v1908
  %v2040 = vtanh.pop %v1910
  %v2041 = vtanh.pop %v1991
  %v2042 = vtanh.pop %v1993
  %v2043 = vld [vmem:[%s4] sm:$0xff]
  %v2044 = vld [vmem:[%s4 + $0x8] sm:$0xff]
  %v2045 = vld [vmem:[%s4 + $0x10] sm:$0xf]
  %v2046 = vld [vmem:[%s4] sm:$0x1]
  %2048 = vset.pattern.permute.xlu0 0
  %2049 = vperm.xlu0 %2048, %v2043
  %v2050 = vpop.permute.xlu0 %2049
  %2053 = vset.pattern.permute.xlu0 0
  %2054 = vperm.xlu0 %2053, %v2044
  %v2055 = vpop.permute.xlu0 %2054
  %2058 = vset.pattern.permute.xlu0 0
  %2059 = vperm.xlu0 %2058, %v2045
  %v2060 = vpop.permute.xlu0 %2059
  %v2062 = vmul.f32 %v1995, %v2050
  %v2063 = vmul.f32 %v1996, %v2050
  %v2064 = vmul.f32 %v1997, %v2050
  %v2065 = vmul.f32 %v1998, %v2050
  %v2066 = vmul.f32 %v1999, %v2050
  %v2067 = vmul.f32 %v2000, %v2050
  %v2068 = vmul.f32 %v2001, %v2050
  %v2069 = vmul.f32 %v2002, %v2050
  %v2070 = vmul.f32 %v2003, %v2050
  %v2071 = vmul.f32 %v2004, %v2050
  %v2072 = vmul.f32 %v2005, %v2050
  %v2073 = vmul.f32 %v2006, %v2050
  %v2074 = vmul.f32 %v2007, %v2050
  %v2075 = vmul.f32 %v2008, %v2050
  %v2076 = vmul.f32 %v2009, %v2050
  %v2077 = vmul.f32 %v2010, %v2050
  %v2078 = vmul.f32 %v2011, %v2055
  %v2079 = vmul.f32 %v2012, %v2055
  %v2080 = vmul.f32 %v2013, %v2055
  %v2081 = vmul.f32 %v2014, %v2055
  %v2082 = vmul.f32 %v2015, %v2055
  %v2083 = vmul.f32 %v2016, %v2055
  %v2084 = vmul.f32 %v2017, %v2055
  %v2085 = vmul.f32 %v2018, %v2055
  %v2086 = vmul.f32 %v2019, %v2055
  %v2087 = vmul.f32 %v2020, %v2055
  %v2088 = vmul.f32 %v2021, %v2055
  %v2089 = vmul.f32 %v2022, %v2055
  %v2090 = vmul.f32 %v2023, %v2055
  %v2091 = vmul.f32 %v2024, %v2055
  %v2092 = vmul.f32 %v2025, %v2055
  %v2093 = vmul.f32 %v2026, %v2055
  %v2094 = vmul.f32 %v2027, %v2060
  %v2095 = vmul.f32 %v2028, %v2060
  %v2096 = vmul.f32 %v2029, %v2060
  %v2097 = vmul.f32 %v2030, %v2060
  %v2098 = vmul.f32 %v2031, %v2060
  %v2099 = vmul.f32 %v2032, %v2060
  %v2100 = vmul.f32 %v2033, %v2060
  %v2101 = vmul.f32 %v2034, %v2060
  %v2102 = vmul.f32 %v2035, %v2060
  %v2103 = vmul.f32 %v2036, %v2060
  %v2104 = vmul.f32 %v2037, %v2060
  %v2105 = vmul.f32 %v2038, %v2060
  %v2106 = vmul.f32 %v2039, %v2060
  %v2107 = vmul.f32 %v2040, %v2060
  %v2108 = vmul.f32 %v2041, %v2060
  %v2109 = vmul.f32 %v2042, %v2060
  %v2110 = vadd.f32 %v2062, %v2078
  %v2111 = vsel %vm498, %v2094, 0.0
  %v2112 = vadd.f32 %v2110, %v2111
  %v2113 = vrot.slane %v2112, 4
  %v2114 = vadd.f32 %v2112, %v2113
  %v2115 = vrot.slane %v2114, 2
  %v2116 = vadd.f32 %v2114, %v2115
  %v2117 = vrot.slane %v2116, 1
  %v2118 = vadd.f32 %v2116, %v2117
  %v2119 = vadd.f32 %v2063, %v2079
  %v2120 = vsel %vm498, %v2095, 0.0
  %v2121 = vadd.f32 %v2119, %v2120
  %v2122 = vrot.slane %v2121, 4
  %v2123 = vadd.f32 %v2121, %v2122
  %v2124 = vrot.slane %v2123, 2
  %v2125 = vadd.f32 %v2123, %v2124
  %v2126 = vrot.slane %v2125, 1
  %v2127 = vadd.f32 %v2125, %v2126
  %v2128 = vadd.f32 %v2064, %v2080
  %v2129 = vsel %vm498, %v2096, 0.0
  %v2130 = vadd.f32 %v2128, %v2129
  %v2131 = vrot.slane %v2130, 4
  %v2132 = vadd.f32 %v2130, %v2131
  %v2133 = vrot.slane %v2132, 2
  %v2134 = vadd.f32 %v2132, %v2133
  %v2135 = vrot.slane %v2134, 1
  %v2136 = vadd.f32 %v2134, %v2135
  %v2137 = vadd.f32 %v2065, %v2081
  %v2138 = vsel %vm498, %v2097, 0.0
  %v2139 = vadd.f32 %v2137, %v2138
  %v2140 = vrot.slane %v2139, 4
  %v2141 = vadd.f32 %v2139, %v2140
  %v2142 = vrot.slane %v2141, 2
  %v2143 = vadd.f32 %v2141, %v2142
  %v2144 = vrot.slane %v2143, 1
  %v2145 = vadd.f32 %v2143, %v2144
  %v2146 = vadd.f32 %v2066, %v2082
  %v2147 = vsel %vm498, %v2098, 0.0
  %v2148 = vadd.f32 %v2146, %v2147
  %v2149 = vrot.slane %v2148, 4
  %v2150 = vadd.f32 %v2148, %v2149
  %v2151 = vrot.slane %v2150, 2
  %v2152 = vadd.f32 %v2150, %v2151
  %v2153 = vrot.slane %v2152, 1
  %v2154 = vadd.f32 %v2152, %v2153
  %v2155 = vadd.f32 %v2067, %v2083
  %v2156 = vsel %vm498, %v2099, 0.0
  %v2157 = vadd.f32 %v2155, %v2156
  %v2158 = vrot.slane %v2157, 4
  %v2159 = vadd.f32 %v2157, %v2158
  %v2160 = vrot.slane %v2159, 2
  %v2161 = vadd.f32 %v2159, %v2160
  %v2162 = vrot.slane %v2161, 1
  %v2163 = vadd.f32 %v2161, %v2162
  %v2164 = vadd.f32 %v2068, %v2084
  %v2165 = vsel %vm498, %v2100, 0.0
  %v2166 = vadd.f32 %v2164, %v2165
  %v2167 = vrot.slane %v2166, 4
  %v2168 = vadd.f32 %v2166, %v2167
  %v2169 = vrot.slane %v2168, 2
  %v2170 = vadd.f32 %v2168, %v2169
  %v2171 = vrot.slane %v2170, 1
  %v2172 = vadd.f32 %v2170, %v2171
  %v2173 = vadd.f32 %v2069, %v2085
  %v2174 = vsel %vm498, %v2101, 0.0
  %v2175 = vadd.f32 %v2173, %v2174
  %v2176 = vrot.slane %v2175, 4
  %v2177 = vadd.f32 %v2175, %v2176
  %v2178 = vrot.slane %v2177, 2
  %v2179 = vadd.f32 %v2177, %v2178
  %v2180 = vrot.slane %v2179, 1
  %v2181 = vadd.f32 %v2179, %v2180
  %v2182 = vadd.f32 %v2070, %v2086
  %v2183 = vsel %vm498, %v2102, 0.0
  %v2184 = vadd.f32 %v2182, %v2183
  %v2185 = vrot.slane %v2184, 4
  %v2186 = vadd.f32 %v2184, %v2185
  %v2187 = vrot.slane %v2186, 2
  %v2188 = vadd.f32 %v2186, %v2187
  %v2189 = vrot.slane %v2188, 1
  %v2190 = vadd.f32 %v2188, %v2189
  %v2191 = vadd.f32 %v2071, %v2087
  %v2192 = vsel %vm498, %v2103, 0.0
  %v2193 = vadd.f32 %v2191, %v2192
  %v2194 = vrot.slane %v2193, 4
  %v2195 = vadd.f32 %v2193, %v2194
  %v2196 = vrot.slane %v2195, 2
  %v2197 = vadd.f32 %v2195, %v2196
  %v2198 = vrot.slane %v2197, 1
  %v2199 = vadd.f32 %v2197, %v2198
  %v2200 = vadd.f32 %v2072, %v2088
  %v2201 = vsel %vm498, %v2104, 0.0
  %v2202 = vadd.f32 %v2200, %v2201
  %v2203 = vrot.slane %v2202, 4
  %v2204 = vadd.f32 %v2202, %v2203
  %v2205 = vrot.slane %v2204, 2
  %v2206 = vadd.f32 %v2204, %v2205
  %v2207 = vrot.slane %v2206, 1
  %v2208 = vadd.f32 %v2206, %v2207
  %v2209 = vadd.f32 %v2073, %v2089
  %v2210 = vsel %vm498, %v2105, 0.0
  %v2211 = vadd.f32 %v2209, %v2210
  %v2212 = vrot.slane %v2211, 4
  %v2213 = vadd.f32 %v2211, %v2212
  %v2214 = vrot.slane %v2213, 2
  %v2215 = vadd.f32 %v2213, %v2214
  %v2216 = vrot.slane %v2215, 1
  %v2217 = vadd.f32 %v2215, %v2216
  %v2218 = vadd.f32 %v2074, %v2090
  %v2219 = vsel %vm498, %v2106, 0.0
  %v2220 = vadd.f32 %v2218, %v2219
  %v2221 = vrot.slane %v2220, 4
  %v2222 = vadd.f32 %v2220, %v2221
  %v2223 = vrot.slane %v2222, 2
  %v2224 = vadd.f32 %v2222, %v2223
  %v2225 = vrot.slane %v2224, 1
  %v2226 = vadd.f32 %v2224, %v2225
  %v2227 = vadd.f32 %v2075, %v2091
  %v2228 = vsel %vm498, %v2107, 0.0
  %v2229 = vadd.f32 %v2227, %v2228
  %v2230 = vrot.slane %v2229, 4
  %v2231 = vadd.f32 %v2229, %v2230
  %v2232 = vrot.slane %v2231, 2
  %v2233 = vadd.f32 %v2231, %v2232
  %v2234 = vrot.slane %v2233, 1
  %v2235 = vadd.f32 %v2233, %v2234
  %v2236 = vadd.f32 %v2076, %v2092
  %v2237 = vsel %vm498, %v2108, 0.0
  %v2238 = vadd.f32 %v2236, %v2237
  %v2239 = vrot.slane %v2238, 4
  %v2240 = vadd.f32 %v2238, %v2239
  %v2241 = vrot.slane %v2240, 2
  %v2242 = vadd.f32 %v2240, %v2241
  %v2243 = vrot.slane %v2242, 1
  %v2244 = vadd.f32 %v2242, %v2243
  %v2245 = vadd.f32 %v2077, %v2093
  %v2246 = vsel %vm498, %v2109, 0.0
  %v2247 = vadd.f32 %v2245, %v2246
  %v2248 = vrot.slane %v2247, 4
  %v2249 = vadd.f32 %v2247, %v2248
  %v2250 = vrot.slane %v2249, 2
  %v2251 = vadd.f32 %v2249, %v2250
  %v2252 = vrot.slane %v2251, 1
  %v2253 = vadd.f32 %v2251, %v2252
  %2255 = vset.pattern.permute.xlu0 1
  %2256 = vperm.xlu0 %2255, %v2046
  %v2257 = vpop.permute.xlu0 %2256
  %v2259 = vadd.f32 %v2118, %v2257
  %v2260 = vadd.f32 %v2127, %v2257
  %v2261 = vadd.f32 %v2136, %v2257
  %v2262 = vadd.f32 %v2145, %v2257
  %v2263 = vadd.f32 %v2154, %v2257
  %v2264 = vadd.f32 %v2163, %v2257
  %v2265 = vadd.f32 %v2172, %v2257
  %v2266 = vadd.f32 %v2181, %v2257
  %v2267 = vadd.f32 %v2190, %v2257
  %v2268 = vadd.f32 %v2199, %v2257
  %v2269 = vadd.f32 %v2208, %v2257
  %v2270 = vadd.f32 %v2217, %v2257
  %v2271 = vadd.f32 %v2226, %v2257
  %v2272 = vadd.f32 %v2235, %v2257
  %v2273 = vadd.f32 %v2244, %v2257
  %v2274 = vadd.f32 %v2253, %v2257
  %v2275 = vmul.f32 %v20, 3.1415927
  %v2276 = vmul.f32 %v22, 3.1415927
  %v2277 = vand.u32 2147483647, %v2275
  %vm2278 = vcmp.le.f32.partialorder %v2277, 0.7853982
  %vm2279 = vcmp.lt.s32.totalorder %v2275, 0
  %v2280 = vand.u32 %v2275, 2139095040
  %v2281 = vshrl.u32 %v2280, 23
  %v2282 = vsub.s32 %v2281, 127
  %v2283 = vand.u32 2147483647, %v2275
  %v2284 = vand.u32 %v2283, 8388607
  %v2285 = vor.u32 %v2284, 8388608
  %v2286 = vsub.s32 0, %v2285
  %v2287 = vadd.s32 %v2282, 1
  %vm2288 = vcmp.gt.s32.totalorder %v2287, 0
  %v2289 = vsel %vm2288, %v2287, 0
  %v2290 = vshrl.u32 %v2289, 5
  %v2291 = vand.u32 %v2289, 31
  %v2292 = vsub.s32 32, %v2291
  %v2293 = vshrl.u32 683565275, %v2292
  %v2294 = vshll.u32 683565275, %v2291
  %v2295 = vshrl.u32 2475754826, %v2292
  %v2296 = vor.u32 %v2294, %v2295
  %v2297 = vshll.u32 2475754826, %v2291
  %v2298 = vshrl.u32 2131351028, %v2292
  %v2299 = vor.u32 %v2297, %v2298
  %v2300 = vshll.u32 2131351028, %v2291
  %v2301 = vshrl.u32 2102212464, %v2292
  %v2302 = vor.u32 %v2300, %v2301
  %v2303 = vshll.u32 2102212464, %v2291
  %v2304 = vshrl.u32 920167782, %v2292
  %v2305 = vor.u32 %v2303, %v2304
  %v2306 = vshll.u32 920167782, %v2291
  %v2307 = vshrl.u32 1326507024, %v2292
  %v2308 = vor.u32 %v2306, %v2307
  %vm2309 = vcmp.lt.s32.totalorder %v2290, 1
  %vm2310 = vcmp.lt.s32.totalorder %v2290, 2
  %vm2311 = vcmp.lt.s32.totalorder %v2290, 3
  %vm2312 = vcmp.lt.s32.totalorder %v2290, 4
  %v2313 = vsel %vm2309, %v2293, %v2296
  %v2314 = vsel %vm2312, %v2302, 2102212464
  %v2315 = vsel %vm2311, %v2299, %v2314
  %v2316 = vsel %vm2310, %v2313, %v2315
  %v2317 = vsel %vm2309, %v2296, %v2299
  %v2318 = vsel %vm2312, %v2305, 920167782
  %v2319 = vsel %vm2311, %v2302, %v2318
  %v2320 = vsel %vm2310, %v2317, %v2319
  %v2321 = vsel %vm2309, %v2299, %v2302
  %v2322 = vsel %vm2312, %v2308, 1326507024
  %v2323 = vsel %vm2311, %v2305, %v2322
  %v2324 = vsel %vm2310, %v2321, %v2323
  %v2325 = vshll.u32 %v2285, 8
  %v2326 = vmul.u32.u64.compose %v2325, %v2324
  %v2327 = vextract.low.u32 %v2326
  %v2328 = vextract.high.u32 %v2326
  %v2329 = vmul.u32.u64.compose %v2325, %v2320
  %v2330 = vextract.low.u32 %v2329
  %v2331 = vextract.high.u32 %v2329
  %v2332 = vmul.u32 %v2325, %v2316
  %v2333 = vadd.s32 %v2328, %v2330
  %vm2334 = vc.u32 %v2328, %v2330
  %v2335 = vadd.s32 %v2331, 1
  %v2336 = vsel %vm2334, %v2335, %v2331
  %v2337 = vadd.s32 %v2332, %v2336
  %v2338 = vadd.s32 %v2337, 536870912
  %v2339 = vshrl.u32 %v2338, 30
  %v2340 = vshll.u32 %v2339, 30
  %v2341 = vsub.s32 %v2337, %v2340
  %vm2342 = vcmp.lt.s32.totalorder %v2341, 0
  %v2343 = vsub.s32 0, %v2341
  %v2344 = vsel %vm2342, %v2343, %v2341
  %v2345 = vclz %v2344
  %v2346 = vsub.s32 %v2345, 2
  %vm2347 = vcmp.gt.s32.totalorder 0, %v2346
  %v2348 = vsel %vm2347, 0, %v2346
  %v2349 = vsub.s32 32, %v2348
  %v2350 = vshll.u32 %v2341, %v2348
  %v2351 = vshrl.u32 %v2333, %v2349
  %v2352 = vor.u32 %v2350, %v2351
  %v2353 = vsub.s32 4294967266, %v2348
  %v2354 = vadd.s32 %v2353, 127
  %v2355 = vshll.u32 %v2354, 23
  %v2356 = vor.u32 4788187, %v2355
  %v2357 = vand.u32 2147483647, %v2356
  %v2359 = vcvt.s32.f32 %v2352
  %v2360 = vmul.f32 %v2359, %v2357
  %v2361 = vxor.u32 %v2360, 2147483648
  %v2362 = vsel %vm2279, %v2361, %v2360
  %v2363 = vsub.s32 4, %v2339
  %v2364 = vsel %vm2279, %v2363, %v2339
  %v2365 = vsel %vm2278, %v2275, %v2362
  %v2366 = vsel %vm2278, 0, %v2364
  %v2367 = vcosq.f32.pop %v2365
  %v2368 = vsinq.f32.pop %v2365
  %vm2369 = vweird.f32 %v2275
  %v2370 = vadd.s32 %v2366, 3
  %v2371 = vand.u32 %v2370, 3
  %vm2372 = vcmp.lt.s32.totalorder %v2371, 2
  %vm2373 = vcmp.eq.s32.totalorder %v2371, 0
  %v2374 = vxor.u32 %v2368, 2147483648
  %v2375 = vsel %vm2373, %v2367, %v2374
  %vm2376 = vcmp.eq.s32.totalorder %v2371, 2
  %v2377 = vxor.u32 %v2367, 2147483648
  %v2378 = vsel %vm2376, %v2377, %v2368
  %v2379 = vsel %vm2372, %v2375, %v2378
  %v2380 = vsel %vm2369, nan, %v2379
  %v2381 = vand.u32 2147483647, %v2276
  %vm2382 = vcmp.le.f32.partialorder %v2381, 0.7853982
  %vm2383 = vcmp.lt.s32.totalorder %v2276, 0
  %v2384 = vand.u32 %v2276, 2139095040
  %v2385 = vshrl.u32 %v2384, 23
  %v2386 = vsub.s32 %v2385, 127
  %v2387 = vand.u32 2147483647, %v2276
  %v2388 = vand.u32 %v2387, 8388607
  %v2389 = vor.u32 %v2388, 8388608
  %v2390 = vsub.s32 0, %v2389
  %v2391 = vadd.s32 %v2386, 1
  %vm2392 = vcmp.gt.s32.totalorder %v2391, 0
  %v2393 = vsel %vm2392, %v2391, 0
  %v2394 = vshrl.u32 %v2393, 5
  %v2395 = vand.u32 %v2393, 31
  %v2396 = vsub.s32 32, %v2395
  %v2397 = vshrl.u32 683565275, %v2396
  %v2398 = vshll.u32 683565275, %v2395
  %v2399 = vshrl.u32 2475754826, %v2396
  %v2400 = vor.u32 %v2398, %v2399
  %v2401 = vshll.u32 2475754826, %v2395
  %v2402 = vshrl.u32 2131351028, %v2396
  %v2403 = vor.u32 %v2401, %v2402
  %v2404 = vshll.u32 2131351028, %v2395
  %v2405 = vshrl.u32 2102212464, %v2396
  %v2406 = vor.u32 %v2404, %v2405
  %v2407 = vshll.u32 2102212464, %v2395
  %v2408 = vshrl.u32 920167782, %v2396
  %v2409 = vor.u32 %v2407, %v2408
  %v2410 = vshll.u32 920167782, %v2395
  %v2411 = vshrl.u32 1326507024, %v2396
  %v2412 = vor.u32 %v2410, %v2411
  %vm2413 = vcmp.lt.s32.totalorder %v2394, 1
  %vm2414 = vcmp.lt.s32.totalorder %v2394, 2
  %vm2415 = vcmp.lt.s32.totalorder %v2394, 3
  %vm2416 = vcmp.lt.s32.totalorder %v2394, 4
  %v2417 = vsel %vm2413, %v2397, %v2400
  %v2418 = vsel %vm2416, %v2406, 2102212464
  %v2419 = vsel %vm2415, %v2403, %v2418
  %v2420 = vsel %vm2414, %v2417, %v2419
  %v2421 = vsel %vm2413, %v2400, %v2403
  %v2422 = vsel %vm2416, %v2409, 920167782
  %v2423 = vsel %vm2415, %v2406, %v2422
  %v2424 = vsel %vm2414, %v2421, %v2423
  %v2425 = vsel %vm2413, %v2403, %v2406
  %v2426 = vsel %vm2416, %v2412, 1326507024
  %v2427 = vsel %vm2415, %v2409, %v2426
  %v2428 = vsel %vm2414, %v2425, %v2427
  %v2429 = vshll.u32 %v2389, 8
  %v2430 = vmul.u32.u64.compose %v2429, %v2428
  %v2431 = vextract.low.u32 %v2430
  %v2432 = vextract.high.u32 %v2430
  %v2433 = vmul.u32.u64.compose %v2429, %v2424
  %v2434 = vextract.low.u32 %v2433
  %v2435 = vextract.high.u32 %v2433
  %v2436 = vmul.u32 %v2429, %v2420
  %v2437 = vadd.s32 %v2432, %v2434
  %vm2438 = vc.u32 %v2432, %v2434
  %v2439 = vadd.s32 %v2435, 1
  %v2440 = vsel %vm2438, %v2439, %v2435
  %v2441 = vadd.s32 %v2436, %v2440
  %v2442 = vadd.s32 %v2441, 536870912
  %v2443 = vshrl.u32 %v2442, 30
  %v2444 = vshll.u32 %v2443, 30
  %v2445 = vsub.s32 %v2441, %v2444
  %vm2446 = vcmp.lt.s32.totalorder %v2445, 0
  %v2447 = vsub.s32 0, %v2445
  %v2448 = vsel %vm2446, %v2447, %v2445
  %v2449 = vclz %v2448
  %v2450 = vsub.s32 %v2449, 2
  %vm2451 = vcmp.gt.s32.totalorder 0, %v2450
  %v2452 = vsel %vm2451, 0, %v2450
  %v2453 = vsub.s32 32, %v2452
  %v2454 = vshll.u32 %v2445, %v2452
  %v2455 = vshrl.u32 %v2437, %v2453
  %v2456 = vor.u32 %v2454, %v2455
  %v2457 = vsub.s32 4294967266, %v2452
  %v2458 = vadd.s32 %v2457, 127
  %v2459 = vshll.u32 %v2458, 23
  %v2460 = vor.u32 4788187, %v2459
  %v2461 = vand.u32 2147483647, %v2460
  %v2463 = vcvt.s32.f32 %v2456
  %v2464 = vmul.f32 %v2463, %v2461
  %v2465 = vxor.u32 %v2464, 2147483648
  %v2466 = vsel %vm2383, %v2465, %v2464
  %v2467 = vsub.s32 4, %v2443
  %v2468 = vsel %vm2383, %v2467, %v2443
  %v2469 = vsel %vm2382, %v2276, %v2466
  %v2470 = vsel %vm2382, 0, %v2468
  %v2471 = vcosq.f32.pop %v2469
  %v2472 = vsinq.f32.pop %v2469
  %vm2473 = vweird.f32 %v2276
  %v2474 = vadd.s32 %v2470, 3
  %v2475 = vand.u32 %v2474, 3
  %vm2476 = vcmp.lt.s32.totalorder %v2475, 2
  %vm2477 = vcmp.eq.s32.totalorder %v2475, 0
  %v2478 = vxor.u32 %v2472, 2147483648
  %v2479 = vsel %vm2477, %v2471, %v2478
  %vm2480 = vcmp.eq.s32.totalorder %v2475, 2
  %v2481 = vxor.u32 %v2471, 2147483648
  %v2482 = vsel %vm2480, %v2481, %v2472
  %v2483 = vsel %vm2476, %v2479, %v2482
  %v2484 = vsel %vm2473, nan, %v2483
  %v2501 = vcombine.low %v2259, %v2260
  %v2502 = vcombine.low %v2261, %v2262
  %v2503 = vcombine.low %v2263, %v2264
  %v2504 = vcombine.low %v2265, %v2266
  %v2506 = vunpack.c.l.s4 1966171168
  %v2507 = vunpack.c.0.s8 %v2506
  %v2508 = vlaneseq
  %v2509 = vshrl.u32 %v2508, 7
  %v2510 = vsub.s32 %v2507, %v2509
  %v2511 = vrot.slane %v2501, %v2510
  %v2513 = vunpack.c.l.s4 1966171168
  %v2514 = vunpack.c.0.s8 %v2513
  %v2515 = vlaneseq
  %v2516 = vshrl.u32 %v2515, 7
  %v2517 = vsub.s32 %v2514, %v2516
  %v2518 = vrot.slane %v2502, %v2517
  %v2520 = vunpack.c.l.s4 1966171168
  %v2521 = vunpack.c.0.s8 %v2520
  %v2522 = vlaneseq
  %v2523 = vshrl.u32 %v2522, 7
  %v2524 = vsub.s32 %v2521, %v2523
  %v2525 = vrot.slane %v2503, %v2524
  %v2527 = vunpack.c.l.s4 1966171168
  %v2528 = vunpack.c.0.s8 %v2527
  %v2529 = vlaneseq
  %v2530 = vshrl.u32 %v2529, 7
  %v2531 = vsub.s32 %v2528, %v2530
  %v2532 = vrot.slane %v2504, %v2531
  %v2533 = vcombine.low %v2511, %v2518
  %v2534 = vcombine.low %v2525, %v2532
  %v2536 = vunpack.c.l.s4 1966171168
  %v2537 = vunpack.c.0.s8 %v2536
  %v2538 = vlaneseq
  %v2539 = vshrl.u32 %v2538, 7
  %v2540 = vsub.s32 %v2537, %v2539
  %v2541 = vrot.slane %v2533, %v2540
  %v2543 = vunpack.c.l.s4 1966171168
  %v2544 = vunpack.c.0.s8 %v2543
  %v2545 = vlaneseq
  %v2546 = vshrl.u32 %v2545, 7
  %v2547 = vsub.s32 %v2544, %v2546
  %v2548 = vrot.slane %v2534, %v2547
  %v2549 = vcombine.low %v2541, %v2548
  %v2550 = vcombine.low %v2267, %v2268
  %v2551 = vcombine.low %v2269, %v2270
  %v2552 = vcombine.low %v2271, %v2272
  %v2553 = vcombine.low %v2273, %v2274
  %v2555 = vunpack.c.l.s4 1966171168
  %v2556 = vunpack.c.0.s8 %v2555
  %v2557 = vlaneseq
  %v2558 = vshrl.u32 %v2557, 7
  %v2559 = vsub.s32 %v2556, %v2558
  %v2560 = vrot.slane %v2550, %v2559
  %v2562 = vunpack.c.l.s4 1966171168
  %v2563 = vunpack.c.0.s8 %v2562
  %v2564 = vlaneseq
  %v2565 = vshrl.u32 %v2564, 7
  %v2566 = vsub.s32 %v2563, %v2565
  %v2567 = vrot.slane %v2551, %v2566
  %v2569 = vunpack.c.l.s4 1966171168
  %v2570 = vunpack.c.0.s8 %v2569
  %v2571 = vlaneseq
  %v2572 = vshrl.u32 %v2571, 7
  %v2573 = vsub.s32 %v2570, %v2572
  %v2574 = vrot.slane %v2552, %v2573
  %v2576 = vunpack.c.l.s4 1966171168
  %v2577 = vunpack.c.0.s8 %v2576
  %v2578 = vlaneseq
  %v2579 = vshrl.u32 %v2578, 7
  %v2580 = vsub.s32 %v2577, %v2579
  %v2581 = vrot.slane %v2553, %v2580
  %v2582 = vcombine.low %v2560, %v2567
  %v2583 = vcombine.low %v2574, %v2581
  %v2585 = vunpack.c.l.s4 1966171168
  %v2586 = vunpack.c.0.s8 %v2585
  %v2587 = vlaneseq
  %v2588 = vshrl.u32 %v2587, 7
  %v2589 = vsub.s32 %v2586, %v2588
  %v2590 = vrot.slane %v2582, %v2589
  %v2592 = vunpack.c.l.s4 1966171168
  %v2593 = vunpack.c.0.s8 %v2592
  %v2594 = vlaneseq
  %v2595 = vshrl.u32 %v2594, 7
  %v2596 = vsub.s32 %v2593, %v2595
  %v2597 = vrot.slane %v2583, %v2596
  %v2598 = vcombine.low %v2590, %v2597
  %v2601 = vmul.f32 %v2380, %v2549
  %v2602 = vmul.f32 %v2484, %v2598
  %2603 = vst [vmem:[%s5] sm:$0xff] %v2601
  %2604 = vst [vmem:[%s5 + $0x8] sm:$0xff] %v2602
  // Predicated region
  $region22: #{pinn_forward.1} parent=0 // pred_check
    _
  $region23: #{pinn_forward.1} parent=0 // pred_check_branch
    %2606 = sbr.rel (0) target = $region25
  $region24: #{pinn_forward.1} parent=0 // pred_region
    _
  $region25: #{pinn_forward.1} parent=0 // pred_fallthru
    _
  // Predicated region
  $region26: #{pinn_forward.1} parent=0 // pred_check
    _
  $region27: #{pinn_forward.1} parent=0 // pred_check_branch
    %2608 = sbr.rel (0) target = $region29
  $region28: #{pinn_forward.1} parent=0 // pred_region
    _
  $region29: #{pinn_forward.1} parent=0 // pred_fallthru
    _

</llo_original>
